<compile_context>
chip_gen: v6e
topology: v6e:2x2x1
jax: 0.10.0
libtpu: 0.0.40
codegen_flags: <defaults>
</compile_context>

<pallas_src>
import functools

import jax
import jax.numpy as jnp
from jax import lax
from jax.experimental import pallas as pl
from jax.experimental.pallas import tpu as pltpu


def tristounet_kernel(x_ref,          # (B, T, D)   f32  batch-first input
                      wih_ref,        # (D, 8H)     bf16 [wih_f | wih_b]
                      bih_ref,        # (1, 8H)     f32  [b_f   | b_b  ]
                      whh_f_ref,      # (H, 4H)     bf16
                      whh_b_ref,      # (H, 4H)     bf16
                      w1a_ref,        # (H, H)      bf16 (rows 0:H   of Linear(2H->H)^T)
                      w1b_ref,        # (H, H)      bf16 (rows H:2H  of Linear(2H->H)^T)
                      b1_ref,         # (1, H)      f32
                      w2_ref,         # (H, H)      bf16
                      b2_ref,         # (1, H)      f32
                      out_ref,        # (B, H)      f32
                      *, hidden_dim):
    B, T, D = x_ref.shape
    H = hidden_dim
    G4 = 4 * H
    f32 = jnp.float32
    bf16 = jnp.bfloat16

    # ---- Hoisted, time-independent input projection for BOTH directions,
    #      biases folded in: one MXU pass outside the serial chain.
    xx = x_ref[...].reshape(B * T, D).astype(bf16)
    gpre = (jnp.dot(xx, wih_ref[...], preferred_element_type=f32)
            + bih_ref[...])                       # (B*T, 8H) f32
    gpre = gpre.reshape(B, T, 2 * G4)             # (B, T, 8H)

    whh_f = whh_f_ref[...]
    whh_b = whh_b_ref[...]

    # Lane mask selecting the "g" gate (PyTorch gate order i, f, g, o):
    # tanh on g-lanes, sigmoid everywhere else. Built once, outside the loop.
    lane = lax.broadcasted_iota(jnp.int32, (2 * B, G4), 1)
    g_mask = (lane >= 2 * H) & (lane < 3 * H)

    # Stacked state along sublanes: rows [0:B] = forward dir, [B:2B] = backward.
    h = jnp.zeros((2 * B, H), f32)
    c = jnp.zeros((2 * B, H), f32)
    acc = jnp.zeros((2 * B, H), f32)

    # ---- Fused bidirectional recurrence: T steps (not 2T), fully unrolled.
    for t in range(T):
        pre = jnp.concatenate(
            [gpre[:, t, :G4],              # fwd pre-gates at time t
             gpre[:, T - 1 - t, G4:]],     # bwd pre-gates at time T-1-t
            axis=0)                        # (2B, 4H)
        h16 = h.astype(bf16)
        rec = jnp.concatenate(
            [jnp.dot(h16[:B], whh_f, preferred_element_type=f32),
             jnp.dot(h16[B:], whh_b, preferred_element_type=f32)],
            axis=0)                        # (2B, 4H)
        gates = pre + rec
        # Whole-register activations + lane select (1 sigmoid + 1 tanh + 1 where).
        act = jnp.where(g_mask, jnp.tanh(gates), jax.nn.sigmoid(gates))
        i_g = act[:, 0 * H:1 * H]
        f_g = act[:, 1 * H:2 * H]
        g_g = act[:, 2 * H:3 * H]
        o_g = act[:, 3 * H:4 * H]
        c = f_g * c + i_g * g_g
        h = o_g * jnp.tanh(c)
        acc = acc + h                      # temporal SUM pooling (as in module)

    # ---- Head: Linear(2H->H) done as two dots (no lane-axis concat), tanh,
    #      Linear(H->H), tanh, unit-normalize via rsqrt.
    acc16 = acc.astype(bf16)
    z1 = jnp.tanh(jnp.dot(acc16[:B], w1a_ref[...], preferred_element_type=f32)
                  + jnp.dot(acc16[B:], w1b_ref[...], preferred_element_type=f32)
                  + b1_ref[...])
    z2 = jnp.tanh(jnp.dot(z1.astype(bf16), w2_ref[...],
                          preferred_element_type=f32) + b2_ref[...])

    inv_norm = lax.rsqrt(jnp.sum(z2 * z2, axis=1, keepdims=True) + 1e-12)
    out_ref[...] = z2 * inv_norm


def tristounet_forward(x, kparams, hidden_dim):
    """x: (B, T, in_dim) float32 -> (B, hidden_dim) float32 unit embeddings."""
    B, T, D = x.shape
    H = hidden_dim

    args = (x,
            kparams["wih_cat"], kparams["b_cat"],
            kparams["whh_f"], kparams["whh_b"],
            kparams["w1a"], kparams["w1b"], kparams["b1"],
            kparams["w2"], kparams["b2"])

    vmem = pl.BlockSpec(memory_space=pltpu.MemorySpace.VMEM)
    return pl.pallas_call(
        functools.partial(tristounet_kernel, hidden_dim=H),
        out_shape=jax.ShapeDtypeStruct((B, H), jnp.float32),
        in_specs=[vmem] * len(args),
        out_specs=vmem,
        compiler_params=pltpu.CompilerParams(vmem_limit_bytes=32 * 1024 * 1024),
    )(*args)


def init_params(key, in_dim, out_dim):
    """Deterministic init mirroring PyTorch LSTM/Linear shapes (pre-transposed)."""
    H, D = out_dim, in_dim
    k_lstm = 1.0 / jnp.sqrt(H)
    keys = jax.random.split(key, 12)

    def u(k, shape, bound):
        return jax.random.uniform(k, shape, jnp.float32, -bound, bound)

    return {
        # forward-direction LSTM (weight_ih_l0^T, weight_hh_l0^T, bias_ih+bias_hh)
        "wih_f": u(keys[0], (D, 4 * H), k_lstm),
        "whh_f": u(keys[1], (H, 4 * H), k_lstm),
        "b_f":   u(keys[2], (1, 4 * H), k_lstm) + u(keys[3], (1, 4 * H), k_lstm),
        # reverse-direction LSTM
        "wih_b": u(keys[4], (D, 4 * H), k_lstm),
        "whh_b": u(keys[5], (H, 4 * H), k_lstm),
        "b_b":   u(keys[6], (1, 4 * H), k_lstm) + u(keys[7], (1, 4 * H), k_lstm),
        # Linear(2H -> H), Linear(H -> H)  (stored transposed: (in, out))
        "w1": u(keys[8], (2 * H, H), 1.0 / jnp.sqrt(2 * H)),
        "b1": u(keys[9], (1, H), 1.0 / jnp.sqrt(2 * H)),
        "w2": u(keys[10], (H, H), 1.0 / jnp.sqrt(H)),
        "b2": u(keys[11], (1, H), 1.0 / jnp.sqrt(H)),
    }


def prepare_kernel_params(p):
    """Pre-concatenate / pre-split / cast weights into the kernel's layout."""
    H = p["whh_f"].shape[0]
    bf16 = jnp.bfloat16
    return {
        "wih_cat": jnp.concatenate([p["wih_f"], p["wih_b"]], axis=1).astype(bf16),
        "b_cat":   jnp.concatenate([p["b_f"], p["b_b"]], axis=1),
        "whh_f":   p["whh_f"].astype(bf16),
        "whh_b":   p["whh_b"].astype(bf16),
        "w1a":     p["w1"][:H].astype(bf16),
        "w1b":     p["w1"][H:].astype(bf16),
        "b1":      p["b1"],
        "w2":      p["w2"].astype(bf16),
        "b2":      p["b2"],
    }


def reference_forward(x, p, H):
    """Pure-JAX (f32) reference for correctness checking."""
    B, T, D = x.shape

    def run_dir(xs, wih, whh, b):
        def step(carry, x_t):
            hh, cc = carry
            g = x_t @ wih + hh @ whh + b
            i = jax.nn.sigmoid(g[:, 0:H])
            f = jax.nn.sigmoid(g[:, H:2 * H])
            gg = jnp.tanh(g[:, 2 * H:3 * H])
            o = jax.nn.sigmoid(g[:, 3 * H:4 * H])
            cc = f * cc + i * gg
            hh = o * jnp.tanh(cc)
            return (hh, cc), hh
        init = (jnp.zeros((B, H)), jnp.zeros((B, H)))
        _, hs = lax.scan(step, init, xs)
        return hs                                # (T, B, H)

    xs = jnp.transpose(x, (1, 0, 2))
    hf = run_dir(xs, p["wih_f"], p["whh_f"], p["b_f"])
    hb = run_dir(xs[::-1], p["wih_b"], p["whh_b"], p["b_b"])
    pooled = jnp.concatenate([hf.sum(0), hb.sum(0)], axis=1)
    z = jnp.tanh(pooled @ p["w1"] + p["b1"])
    z = jnp.tanh(z @ p["w2"] + p["b2"])
    return z / jnp.sqrt(jnp.sum(z * z, axis=1, keepdims=True))


if __name__ == "__main__":
    B, T, IN_DIM, OUT_DIM = 2, 8, 16, 32

    key = jax.random.PRNGKey(0)
    kx, kp = jax.random.split(key)
    x = jax.random.normal(kx, (B, T, IN_DIM), jnp.float32)
    params = init_params(kp, IN_DIM, OUT_DIM)

    # Deployed matrix weights are bf16; round them once so the f32 reference
    # and the bf16 kernel use identical parameter values.
    for name in ("wih_f", "whh_f", "wih_b", "whh_b", "w1", "w2"):
        params[name] = params[name].astype(jnp.bfloat16).astype(jnp.float32)

    kparams = prepare_kernel_params(params)

    out = tristounet_forward(x, kparams, OUT_DIM)
    out = jax.block_until_ready(out)

    ref = reference_forward(x, params, OUT_DIM)
    assert out.shape == (B, OUT_DIM)
    assert bool(jnp.all(jnp.isfinite(out)))
    # embeddings are unit-normalized
    assert bool(jnp.allclose(jnp.linalg.norm(out, axis=1), 1.0, atol=1e-3))
    assert bool(jnp.allclose(out, ref, atol=2.5e-2, rtol=2.5e-2))

    print("KERNEL_OK")
</pallas_src>

<mosaic_0001>
module attributes {stable_mosaic.version = 11 : i64} {
  func.func @tristounet_kernel(%arg0: memref<2x8x16xf32, #tpu.memory_space<vmem>>, %arg1: memref<16x256xbf16, #tpu.memory_space<vmem>>, %arg2: memref<1x256xf32, #tpu.memory_space<vmem>>, %arg3: memref<32x128xbf16, #tpu.memory_space<vmem>>, %arg4: memref<32x128xbf16, #tpu.memory_space<vmem>>, %arg5: memref<32x32xbf16, #tpu.memory_space<vmem>>, %arg6: memref<32x32xbf16, #tpu.memory_space<vmem>>, %arg7: memref<1x32xf32, #tpu.memory_space<vmem>>, %arg8: memref<32x32xbf16, #tpu.memory_space<vmem>>, %arg9: memref<1x32xf32, #tpu.memory_space<vmem>>, %arg10: memref<2x32xf32, #tpu.memory_space<vmem>>) attributes {dimension_semantics = [], scalar_prefetch = 0 : i64, scratch_operands = 0 : i64, tpu.core_type = #tpu.core_type<tc>} {
    %c0 = arith.constant 0 : index
    %c0_0 = arith.constant 0 : index
    %c0_1 = arith.constant 0 : index
    %0 = vector.load %arg0[%c0, %c0_0, %c0_1] : memref<2x8x16xf32, #tpu.memory_space<vmem>>, vector<2x8x16xf32>
    %1 = vector.shape_cast %0 : vector<2x8x16xf32> to vector<16x16xf32>
    %2 = arith.truncf %1 : vector<16x16xf32> to vector<16x16xbf16>
    %c0_2 = arith.constant 0 : index
    %c0_3 = arith.constant 0 : index
    %3 = vector.load %arg1[%c0_2, %c0_3] : memref<16x256xbf16, #tpu.memory_space<vmem>>, vector<16x256xbf16>
    %cst = arith.constant dense<0.000000e+00> : vector<16x256xf32>
    %4 = tpu.matmul %2, %3, %cst {dimension_numbers = #tpu.dot_dimension_numbers<[1], [0], [0], [1], [0, 0, 1, 1], [], []>} : vector<16x16xbf16>, vector<16x256xbf16>, vector<16x256xf32> -> vector<16x256xf32>
    %c0_4 = arith.constant 0 : index
    %c0_5 = arith.constant 0 : index
    %5 = vector.load %arg2[%c0_4, %c0_5] : memref<1x256xf32, #tpu.memory_space<vmem>>, vector<1x256xf32>
    %6 = vector.broadcast %5 : vector<1x256xf32> to vector<16x256xf32>
    %7 = arith.addf %4, %6 : vector<16x256xf32>
    %8 = vector.shape_cast %7 : vector<16x256xf32> to vector<2x8x256xf32>
    %c0_6 = arith.constant 0 : index
    %c0_7 = arith.constant 0 : index
    %9 = vector.load %arg3[%c0_6, %c0_7] : memref<32x128xbf16, #tpu.memory_space<vmem>>, vector<32x128xbf16>
    %c0_8 = arith.constant 0 : index
    %c0_9 = arith.constant 0 : index
    %10 = vector.load %arg4[%c0_8, %c0_9] : memref<32x128xbf16, #tpu.memory_space<vmem>>, vector<32x128xbf16>
    %11 = tpu.iota {dimensions = array<i32: 1>} : vector<4x128xi32>
    %c64_i32 = arith.constant 64 : i32
    %12 = vector.broadcast %c64_i32 : i32 to vector<4x128xi32>
    %13 = arith.cmpi sge, %11, %12 : vector<4x128xi32>
    %c96_i32 = arith.constant 96 : i32
    %14 = vector.broadcast %c96_i32 : i32 to vector<4x128xi32>
    %15 = arith.cmpi slt, %11, %14 : vector<4x128xi32>
    %16 = arith.andi %13, %15 : vector<4x128xi1>
    %cst_10 = arith.constant 0.000000e+00 : f32
    %17 = vector.broadcast %cst_10 : f32 to vector<4x32xf32>
    %cst_11 = arith.constant 0.000000e+00 : f32
    %18 = vector.broadcast %cst_11 : f32 to vector<4x32xf32>
    %cst_12 = arith.constant 0.000000e+00 : f32
    %19 = vector.broadcast %cst_12 : f32 to vector<4x32xf32>
    %20 = vector.extract_strided_slice %8 {offsets = [0, 0, 0], sizes = [2, 1, 128], strides = [1, 1, 1]} : vector<2x8x256xf32> to vector<2x1x128xf32>
    %21 = vector.shape_cast %20 : vector<2x1x128xf32> to vector<2x128xf32>
    %22 = vector.extract_strided_slice %8 {offsets = [0, 7, 128], sizes = [2, 1, 128], strides = [1, 1, 1]} : vector<2x8x256xf32> to vector<2x1x128xf32>
    %23 = vector.shape_cast %22 : vector<2x1x128xf32> to vector<2x128xf32>
    %24 = tpu.concatenate %21, %23 in 0 : vector<2x128xf32>, vector<2x128xf32> -> vector<4x128xf32>
    %25 = arith.truncf %17 : vector<4x32xf32> to vector<4x32xbf16>
    %26 = vector.extract_strided_slice %25 {offsets = [0, 0], sizes = [2, 32], strides = [1, 1]} : vector<4x32xbf16> to vector<2x32xbf16>
    %cst_13 = arith.constant dense<0.000000e+00> : vector<2x128xf32>
    %27 = tpu.matmul %26, %9, %cst_13 {dimension_numbers = #tpu.dot_dimension_numbers<[1], [0], [0], [1], [0, 0, 1, 1], [], []>} : vector<2x32xbf16>, vector<32x128xbf16>, vector<2x128xf32> -> vector<2x128xf32>
    %28 = vector.extract_strided_slice %25 {offsets = [2, 0], sizes = [2, 32], strides = [1, 1]} : vector<4x32xbf16> to vector<2x32xbf16>
    %cst_14 = arith.constant dense<0.000000e+00> : vector<2x128xf32>
    %29 = tpu.matmul %28, %10, %cst_14 {dimension_numbers = #tpu.dot_dimension_numbers<[1], [0], [0], [1], [0, 0, 1, 1], [], []>} : vector<2x32xbf16>, vector<32x128xbf16>, vector<2x128xf32> -> vector<2x128xf32>
    %30 = tpu.concatenate %27, %29 in 0 : vector<2x128xf32>, vector<2x128xf32> -> vector<4x128xf32>
    %31 = arith.addf %24, %30 : vector<4x128xf32>
    %32 = math.tanh %31 : vector<4x128xf32>
    %33 = arith.negf %31 : vector<4x128xf32>
    %34 = math.exp %33 : vector<4x128xf32>
    %cst_15 = arith.constant 1.000000e+00 : f32
    %35 = vector.broadcast %cst_15 : f32 to vector<4x128xf32>
    %36 = arith.addf %35, %34 : vector<4x128xf32>
    %37 = arith.divf %35, %36 : vector<4x128xf32>
    %38 = arith.select %16, %32, %37 : vector<4x128xi1>, vector<4x128xf32>
    %39 = vector.extract_strided_slice %38 {offsets = [0, 0], sizes = [4, 32], strides = [1, 1]} : vector<4x128xf32> to vector<4x32xf32>
    %40 = vector.extract_strided_slice %38 {offsets = [0, 32], sizes = [4, 32], strides = [1, 1]} : vector<4x128xf32> to vector<4x32xf32>
    %41 = vector.extract_strided_slice %38 {offsets = [0, 64], sizes = [4, 32], strides = [1, 1]} : vector<4x128xf32> to vector<4x32xf32>
    %42 = vector.extract_strided_slice %38 {offsets = [0, 96], sizes = [4, 32], strides = [1, 1]} : vector<4x128xf32> to vector<4x32xf32>
    %43 = arith.mulf %40, %18 : vector<4x32xf32>
    %44 = arith.mulf %39, %41 : vector<4x32xf32>
    %45 = arith.addf %43, %44 : vector<4x32xf32>
    %46 = math.tanh %45 : vector<4x32xf32>
    %47 = arith.mulf %42, %46 : vector<4x32xf32>
    %48 = arith.addf %19, %47 : vector<4x32xf32>
    %49 = vector.extract_strided_slice %8 {offsets = [0, 1, 0], sizes = [2, 1, 128], strides = [1, 1, 1]} : vector<2x8x256xf32> to vector<2x1x128xf32>
    %50 = vector.shape_cast %49 : vector<2x1x128xf32> to vector<2x128xf32>
    %51 = vector.extract_strided_slice %8 {offsets = [0, 6, 128], sizes = [2, 1, 128], strides = [1, 1, 1]} : vector<2x8x256xf32> to vector<2x1x128xf32>
    %52 = vector.shape_cast %51 : vector<2x1x128xf32> to vector<2x128xf32>
    %53 = tpu.concatenate %50, %52 in 0 : vector<2x128xf32>, vector<2x128xf32> -> vector<4x128xf32>
    %54 = arith.truncf %47 : vector<4x32xf32> to vector<4x32xbf16>
    %55 = vector.extract_strided_slice %54 {offsets = [0, 0], sizes = [2, 32], strides = [1, 1]} : vector<4x32xbf16> to vector<2x32xbf16>
    %cst_16 = arith.constant dense<0.000000e+00> : vector<2x128xf32>
    %56 = tpu.matmul %55, %9, %cst_16 {dimension_numbers = #tpu.dot_dimension_numbers<[1], [0], [0], [1], [0, 0, 1, 1], [], []>} : vector<2x32xbf16>, vector<32x128xbf16>, vector<2x128xf32> -> vector<2x128xf32>
    %57 = vector.extract_strided_slice %54 {offsets = [2, 0], sizes = [2, 32], strides = [1, 1]} : vector<4x32xbf16> to vector<2x32xbf16>
    %cst_17 = arith.constant dense<0.000000e+00> : vector<2x128xf32>
    %58 = tpu.matmul %57, %10, %cst_17 {dimension_numbers = #tpu.dot_dimension_numbers<[1], [0], [0], [1], [0, 0, 1, 1], [], []>} : vector<2x32xbf16>, vector<32x128xbf16>, vector<2x128xf32> -> vector<2x128xf32>
    %59 = tpu.concatenate %56, %58 in 0 : vector<2x128xf32>, vector<2x128xf32> -> vector<4x128xf32>
    %60 = arith.addf %53, %59 : vector<4x128xf32>
    %61 = math.tanh %60 : vector<4x128xf32>
    %62 = arith.negf %60 : vector<4x128xf32>
    %63 = math.exp %62 : vector<4x128xf32>
    %cst_18 = arith.constant 1.000000e+00 : f32
    %64 = vector.broadcast %cst_18 : f32 to vector<4x128xf32>
    %65 = arith.addf %64, %63 : vector<4x128xf32>
    %66 = arith.divf %64, %65 : vector<4x128xf32>
    %67 = arith.select %16, %61, %66 : vector<4x128xi1>, vector<4x128xf32>
    %68 = vector.extract_strided_slice %67 {offsets = [0, 0], sizes = [4, 32], strides = [1, 1]} : vector<4x128xf32> to vector<4x32xf32>
    %69 = vector.extract_strided_slice %67 {offsets = [0, 32], sizes = [4, 32], strides = [1, 1]} : vector<4x128xf32> to vector<4x32xf32>
    %70 = vector.extract_strided_slice %67 {offsets = [0, 64], sizes = [4, 32], strides = [1, 1]} : vector<4x128xf32> to vector<4x32xf32>
    %71 = vector.extract_strided_slice %67 {offsets = [0, 96], sizes = [4, 32], strides = [1, 1]} : vector<4x128xf32> to vector<4x32xf32>
    %72 = arith.mulf %69, %45 : vector<4x32xf32>
    %73 = arith.mulf %68, %70 : vector<4x32xf32>
    %74 = arith.addf %72, %73 : vector<4x32xf32>
    %75 = math.tanh %74 : vector<4x32xf32>
    %76 = arith.mulf %71, %75 : vector<4x32xf32>
    %77 = arith.addf %48, %76 : vector<4x32xf32>
    %78 = vector.extract_strided_slice %8 {offsets = [0, 2, 0], sizes = [2, 1, 128], strides = [1, 1, 1]} : vector<2x8x256xf32> to vector<2x1x128xf32>
    %79 = vector.shape_cast %78 : vector<2x1x128xf32> to vector<2x128xf32>
    %80 = vector.extract_strided_slice %8 {offsets = [0, 5, 128], sizes = [2, 1, 128], strides = [1, 1, 1]} : vector<2x8x256xf32> to vector<2x1x128xf32>
    %81 = vector.shape_cast %80 : vector<2x1x128xf32> to vector<2x128xf32>
    %82 = tpu.concatenate %79, %81 in 0 : vector<2x128xf32>, vector<2x128xf32> -> vector<4x128xf32>
    %83 = arith.truncf %76 : vector<4x32xf32> to vector<4x32xbf16>
    %84 = vector.extract_strided_slice %83 {offsets = [0, 0], sizes = [2, 32], strides = [1, 1]} : vector<4x32xbf16> to vector<2x32xbf16>
    %cst_19 = arith.constant dense<0.000000e+00> : vector<2x128xf32>
    %85 = tpu.matmul %84, %9, %cst_19 {dimension_numbers = #tpu.dot_dimension_numbers<[1], [0], [0], [1], [0, 0, 1, 1], [], []>} : vector<2x32xbf16>, vector<32x128xbf16>, vector<2x128xf32> -> vector<2x128xf32>
    %86 = vector.extract_strided_slice %83 {offsets = [2, 0], sizes = [2, 32], strides = [1, 1]} : vector<4x32xbf16> to vector<2x32xbf16>
    %cst_20 = arith.constant dense<0.000000e+00> : vector<2x128xf32>
    %87 = tpu.matmul %86, %10, %cst_20 {dimension_numbers = #tpu.dot_dimension_numbers<[1], [0], [0], [1], [0, 0, 1, 1], [], []>} : vector<2x32xbf16>, vector<32x128xbf16>, vector<2x128xf32> -> vector<2x128xf32>
    %88 = tpu.concatenate %85, %87 in 0 : vector<2x128xf32>, vector<2x128xf32> -> vector<4x128xf32>
    %89 = arith.addf %82, %88 : vector<4x128xf32>
    %90 = math.tanh %89 : vector<4x128xf32>
    %91 = arith.negf %89 : vector<4x128xf32>
    %92 = math.exp %91 : vector<4x128xf32>
    %cst_21 = arith.constant 1.000000e+00 : f32
    %93 = vector.broadcast %cst_21 : f32 to vector<4x128xf32>
    %94 = arith.addf %93, %92 : vector<4x128xf32>
    %95 = arith.divf %93, %94 : vector<4x128xf32>
    %96 = arith.select %16, %90, %95 : vector<4x128xi1>, vector<4x128xf32>
    %97 = vector.extract_strided_slice %96 {offsets = [0, 0], sizes = [4, 32], strides = [1, 1]} : vector<4x128xf32> to vector<4x32xf32>
    %98 = vector.extract_strided_slice %96 {offsets = [0, 32], sizes = [4, 32], strides = [1, 1]} : vector<4x128xf32> to vector<4x32xf32>
    %99 = vector.extract_strided_slice %96 {offsets = [0, 64], sizes = [4, 32], strides = [1, 1]} : vector<4x128xf32> to vector<4x32xf32>
    %100 = vector.extract_strided_slice %96 {offsets = [0, 96], sizes = [4, 32], strides = [1, 1]} : vector<4x128xf32> to vector<4x32xf32>
    %101 = arith.mulf %98, %74 : vector<4x32xf32>
    %102 = arith.mulf %97, %99 : vector<4x32xf32>
    %103 = arith.addf %101, %102 : vector<4x32xf32>
    %104 = math.tanh %103 : vector<4x32xf32>
    %105 = arith.mulf %100, %104 : vector<4x32xf32>
    %106 = arith.addf %77, %105 : vector<4x32xf32>
    %107 = vector.extract_strided_slice %8 {offsets = [0, 3, 0], sizes = [2, 1, 128], strides = [1, 1, 1]} : vector<2x8x256xf32> to vector<2x1x128xf32>
    %108 = vector.shape_cast %107 : vector<2x1x128xf32> to vector<2x128xf32>
    %109 = vector.extract_strided_slice %8 {offsets = [0, 4, 128], sizes = [2, 1, 128], strides = [1, 1, 1]} : vector<2x8x256xf32> to vector<2x1x128xf32>
    %110 = vector.shape_cast %109 : vector<2x1x128xf32> to vector<2x128xf32>
    %111 = tpu.concatenate %108, %110 in 0 : vector<2x128xf32>, vector<2x128xf32> -> vector<4x128xf32>
    %112 = arith.truncf %105 : vector<4x32xf32> to vector<4x32xbf16>
    %113 = vector.extract_strided_slice %112 {offsets = [0, 0], sizes = [2, 32], strides = [1, 1]} : vector<4x32xbf16> to vector<2x32xbf16>
    %cst_22 = arith.constant dense<0.000000e+00> : vector<2x128xf32>
    %114 = tpu.matmul %113, %9, %cst_22 {dimension_numbers = #tpu.dot_dimension_numbers<[1], [0], [0], [1], [0, 0, 1, 1], [], []>} : vector<2x32xbf16>, vector<32x128xbf16>, vector<2x128xf32> -> vector<2x128xf32>
    %115 = vector.extract_strided_slice %112 {offsets = [2, 0], sizes = [2, 32], strides = [1, 1]} : vector<4x32xbf16> to vector<2x32xbf16>
    %cst_23 = arith.constant dense<0.000000e+00> : vector<2x128xf32>
    %116 = tpu.matmul %115, %10, %cst_23 {dimension_numbers = #tpu.dot_dimension_numbers<[1], [0], [0], [1], [0, 0, 1, 1], [], []>} : vector<2x32xbf16>, vector<32x128xbf16>, vector<2x128xf32> -> vector<2x128xf32>
    %117 = tpu.concatenate %114, %116 in 0 : vector<2x128xf32>, vector<2x128xf32> -> vector<4x128xf32>
    %118 = arith.addf %111, %117 : vector<4x128xf32>
    %119 = math.tanh %118 : vector<4x128xf32>
    %120 = arith.negf %118 : vector<4x128xf32>
    %121 = math.exp %120 : vector<4x128xf32>
    %cst_24 = arith.constant 1.000000e+00 : f32
    %122 = vector.broadcast %cst_24 : f32 to vector<4x128xf32>
    %123 = arith.addf %122, %121 : vector<4x128xf32>
    %124 = arith.divf %122, %123 : vector<4x128xf32>
    %125 = arith.select %16, %119, %124 : vector<4x128xi1>, vector<4x128xf32>
    %126 = vector.extract_strided_slice %125 {offsets = [0, 0], sizes = [4, 32], strides = [1, 1]} : vector<4x128xf32> to vector<4x32xf32>
    %127 = vector.extract_strided_slice %125 {offsets = [0, 32], sizes = [4, 32], strides = [1, 1]} : vector<4x128xf32> to vector<4x32xf32>
    %128 = vector.extract_strided_slice %125 {offsets = [0, 64], sizes = [4, 32], strides = [1, 1]} : vector<4x128xf32> to vector<4x32xf32>
    %129 = vector.extract_strided_slice %125 {offsets = [0, 96], sizes = [4, 32], strides = [1, 1]} : vector<4x128xf32> to vector<4x32xf32>
    %130 = arith.mulf %127, %103 : vector<4x32xf32>
    %131 = arith.mulf %126, %128 : vector<4x32xf32>
    %132 = arith.addf %130, %131 : vector<4x32xf32>
    %133 = math.tanh %132 : vector<4x32xf32>
    %134 = arith.mulf %129, %133 : vector<4x32xf32>
    %135 = arith.addf %106, %134 : vector<4x32xf32>
    %136 = vector.extract_strided_slice %8 {offsets = [0, 4, 0], sizes = [2, 1, 128], strides = [1, 1, 1]} : vector<2x8x256xf32> to vector<2x1x128xf32>
    %137 = vector.shape_cast %136 : vector<2x1x128xf32> to vector<2x128xf32>
    %138 = vector.extract_strided_slice %8 {offsets = [0, 3, 128], sizes = [2, 1, 128], strides = [1, 1, 1]} : vector<2x8x256xf32> to vector<2x1x128xf32>
    %139 = vector.shape_cast %138 : vector<2x1x128xf32> to vector<2x128xf32>
    %140 = tpu.concatenate %137, %139 in 0 : vector<2x128xf32>, vector<2x128xf32> -> vector<4x128xf32>
    %141 = arith.truncf %134 : vector<4x32xf32> to vector<4x32xbf16>
    %142 = vector.extract_strided_slice %141 {offsets = [0, 0], sizes = [2, 32], strides = [1, 1]} : vector<4x32xbf16> to vector<2x32xbf16>
    %cst_25 = arith.constant dense<0.000000e+00> : vector<2x128xf32>
    %143 = tpu.matmul %142, %9, %cst_25 {dimension_numbers = #tpu.dot_dimension_numbers<[1], [0], [0], [1], [0, 0, 1, 1], [], []>} : vector<2x32xbf16>, vector<32x128xbf16>, vector<2x128xf32> -> vector<2x128xf32>
    %144 = vector.extract_strided_slice %141 {offsets = [2, 0], sizes = [2, 32], strides = [1, 1]} : vector<4x32xbf16> to vector<2x32xbf16>
    %cst_26 = arith.constant dense<0.000000e+00> : vector<2x128xf32>
    %145 = tpu.matmul %144, %10, %cst_26 {dimension_numbers = #tpu.dot_dimension_numbers<[1], [0], [0], [1], [0, 0, 1, 1], [], []>} : vector<2x32xbf16>, vector<32x128xbf16>, vector<2x128xf32> -> vector<2x128xf32>
    %146 = tpu.concatenate %143, %145 in 0 : vector<2x128xf32>, vector<2x128xf32> -> vector<4x128xf32>
    %147 = arith.addf %140, %146 : vector<4x128xf32>
    %148 = math.tanh %147 : vector<4x128xf32>
    %149 = arith.negf %147 : vector<4x128xf32>
    %150 = math.exp %149 : vector<4x128xf32>
    %cst_27 = arith.constant 1.000000e+00 : f32
    %151 = vector.broadcast %cst_27 : f32 to vector<4x128xf32>
    %152 = arith.addf %151, %150 : vector<4x128xf32>
    %153 = arith.divf %151, %152 : vector<4x128xf32>
    %154 = arith.select %16, %148, %153 : vector<4x128xi1>, vector<4x128xf32>
    %155 = vector.extract_strided_slice %154 {offsets = [0, 0], sizes = [4, 32], strides = [1, 1]} : vector<4x128xf32> to vector<4x32xf32>
    %156 = vector.extract_strided_slice %154 {offsets = [0, 32], sizes = [4, 32], strides = [1, 1]} : vector<4x128xf32> to vector<4x32xf32>
    %157 = vector.extract_strided_slice %154 {offsets = [0, 64], sizes = [4, 32], strides = [1, 1]} : vector<4x128xf32> to vector<4x32xf32>
    %158 = vector.extract_strided_slice %154 {offsets = [0, 96], sizes = [4, 32], strides = [1, 1]} : vector<4x128xf32> to vector<4x32xf32>
    %159 = arith.mulf %156, %132 : vector<4x32xf32>
    %160 = arith.mulf %155, %157 : vector<4x32xf32>
    %161 = arith.addf %159, %160 : vector<4x32xf32>
    %162 = math.tanh %161 : vector<4x32xf32>
    %163 = arith.mulf %158, %162 : vector<4x32xf32>
    %164 = arith.addf %135, %163 : vector<4x32xf32>
    %165 = vector.extract_strided_slice %8 {offsets = [0, 5, 0], sizes = [2, 1, 128], strides = [1, 1, 1]} : vector<2x8x256xf32> to vector<2x1x128xf32>
    %166 = vector.shape_cast %165 : vector<2x1x128xf32> to vector<2x128xf32>
    %167 = vector.extract_strided_slice %8 {offsets = [0, 2, 128], sizes = [2, 1, 128], strides = [1, 1, 1]} : vector<2x8x256xf32> to vector<2x1x128xf32>
    %168 = vector.shape_cast %167 : vector<2x1x128xf32> to vector<2x128xf32>
    %169 = tpu.concatenate %166, %168 in 0 : vector<2x128xf32>, vector<2x128xf32> -> vector<4x128xf32>
    %170 = arith.truncf %163 : vector<4x32xf32> to vector<4x32xbf16>
    %171 = vector.extract_strided_slice %170 {offsets = [0, 0], sizes = [2, 32], strides = [1, 1]} : vector<4x32xbf16> to vector<2x32xbf16>
    %cst_28 = arith.constant dense<0.000000e+00> : vector<2x128xf32>
    %172 = tpu.matmul %171, %9, %cst_28 {dimension_numbers = #tpu.dot_dimension_numbers<[1], [0], [0], [1], [0, 0, 1, 1], [], []>} : vector<2x32xbf16>, vector<32x128xbf16>, vector<2x128xf32> -> vector<2x128xf32>
    %173 = vector.extract_strided_slice %170 {offsets = [2, 0], sizes = [2, 32], strides = [1, 1]} : vector<4x32xbf16> to vector<2x32xbf16>
    %cst_29 = arith.constant dense<0.000000e+00> : vector<2x128xf32>
    %174 = tpu.matmul %173, %10, %cst_29 {dimension_numbers = #tpu.dot_dimension_numbers<[1], [0], [0], [1], [0, 0, 1, 1], [], []>} : vector<2x32xbf16>, vector<32x128xbf16>, vector<2x128xf32> -> vector<2x128xf32>
    %175 = tpu.concatenate %172, %174 in 0 : vector<2x128xf32>, vector<2x128xf32> -> vector<4x128xf32>
    %176 = arith.addf %169, %175 : vector<4x128xf32>
    %177 = math.tanh %176 : vector<4x128xf32>
    %178 = arith.negf %176 : vector<4x128xf32>
    %179 = math.exp %178 : vector<4x128xf32>
    %cst_30 = arith.constant 1.000000e+00 : f32
    %180 = vector.broadcast %cst_30 : f32 to vector<4x128xf32>
    %181 = arith.addf %180, %179 : vector<4x128xf32>
    %182 = arith.divf %180, %181 : vector<4x128xf32>
    %183 = arith.select %16, %177, %182 : vector<4x128xi1>, vector<4x128xf32>
    %184 = vector.extract_strided_slice %183 {offsets = [0, 0], sizes = [4, 32], strides = [1, 1]} : vector<4x128xf32> to vector<4x32xf32>
    %185 = vector.extract_strided_slice %183 {offsets = [0, 32], sizes = [4, 32], strides = [1, 1]} : vector<4x128xf32> to vector<4x32xf32>
    %186 = vector.extract_strided_slice %183 {offsets = [0, 64], sizes = [4, 32], strides = [1, 1]} : vector<4x128xf32> to vector<4x32xf32>
    %187 = vector.extract_strided_slice %183 {offsets = [0, 96], sizes = [4, 32], strides = [1, 1]} : vector<4x128xf32> to vector<4x32xf32>
    %188 = arith.mulf %185, %161 : vector<4x32xf32>
    %189 = arith.mulf %184, %186 : vector<4x32xf32>
    %190 = arith.addf %188, %189 : vector<4x32xf32>
    %191 = math.tanh %190 : vector<4x32xf32>
    %192 = arith.mulf %187, %191 : vector<4x32xf32>
    %193 = arith.addf %164, %192 : vector<4x32xf32>
    %194 = vector.extract_strided_slice %8 {offsets = [0, 6, 0], sizes = [2, 1, 128], strides = [1, 1, 1]} : vector<2x8x256xf32> to vector<2x1x128xf32>
    %195 = vector.shape_cast %194 : vector<2x1x128xf32> to vector<2x128xf32>
    %196 = vector.extract_strided_slice %8 {offsets = [0, 1, 128], sizes = [2, 1, 128], strides = [1, 1, 1]} : vector<2x8x256xf32> to vector<2x1x128xf32>
    %197 = vector.shape_cast %196 : vector<2x1x128xf32> to vector<2x128xf32>
    %198 = tpu.concatenate %195, %197 in 0 : vector<2x128xf32>, vector<2x128xf32> -> vector<4x128xf32>
    %199 = arith.truncf %192 : vector<4x32xf32> to vector<4x32xbf16>
    %200 = vector.extract_strided_slice %199 {offsets = [0, 0], sizes = [2, 32], strides = [1, 1]} : vector<4x32xbf16> to vector<2x32xbf16>
    %cst_31 = arith.constant dense<0.000000e+00> : vector<2x128xf32>
    %201 = tpu.matmul %200, %9, %cst_31 {dimension_numbers = #tpu.dot_dimension_numbers<[1], [0], [0], [1], [0, 0, 1, 1], [], []>} : vector<2x32xbf16>, vector<32x128xbf16>, vector<2x128xf32> -> vector<2x128xf32>
    %202 = vector.extract_strided_slice %199 {offsets = [2, 0], sizes = [2, 32], strides = [1, 1]} : vector<4x32xbf16> to vector<2x32xbf16>
    %cst_32 = arith.constant dense<0.000000e+00> : vector<2x128xf32>
    %203 = tpu.matmul %202, %10, %cst_32 {dimension_numbers = #tpu.dot_dimension_numbers<[1], [0], [0], [1], [0, 0, 1, 1], [], []>} : vector<2x32xbf16>, vector<32x128xbf16>, vector<2x128xf32> -> vector<2x128xf32>
    %204 = tpu.concatenate %201, %203 in 0 : vector<2x128xf32>, vector<2x128xf32> -> vector<4x128xf32>
    %205 = arith.addf %198, %204 : vector<4x128xf32>
    %206 = math.tanh %205 : vector<4x128xf32>
    %207 = arith.negf %205 : vector<4x128xf32>
    %208 = math.exp %207 : vector<4x128xf32>
    %cst_33 = arith.constant 1.000000e+00 : f32
    %209 = vector.broadcast %cst_33 : f32 to vector<4x128xf32>
    %210 = arith.addf %209, %208 : vector<4x128xf32>
    %211 = arith.divf %209, %210 : vector<4x128xf32>
    %212 = arith.select %16, %206, %211 : vector<4x128xi1>, vector<4x128xf32>
    %213 = vector.extract_strided_slice %212 {offsets = [0, 0], sizes = [4, 32], strides = [1, 1]} : vector<4x128xf32> to vector<4x32xf32>
    %214 = vector.extract_strided_slice %212 {offsets = [0, 32], sizes = [4, 32], strides = [1, 1]} : vector<4x128xf32> to vector<4x32xf32>
    %215 = vector.extract_strided_slice %212 {offsets = [0, 64], sizes = [4, 32], strides = [1, 1]} : vector<4x128xf32> to vector<4x32xf32>
    %216 = vector.extract_strided_slice %212 {offsets = [0, 96], sizes = [4, 32], strides = [1, 1]} : vector<4x128xf32> to vector<4x32xf32>
    %217 = arith.mulf %214, %190 : vector<4x32xf32>
    %218 = arith.mulf %213, %215 : vector<4x32xf32>
    %219 = arith.addf %217, %218 : vector<4x32xf32>
    %220 = math.tanh %219 : vector<4x32xf32>
    %221 = arith.mulf %216, %220 : vector<4x32xf32>
    %222 = arith.addf %193, %221 : vector<4x32xf32>
    %223 = vector.extract_strided_slice %8 {offsets = [0, 7, 0], sizes = [2, 1, 128], strides = [1, 1, 1]} : vector<2x8x256xf32> to vector<2x1x128xf32>
    %224 = vector.shape_cast %223 : vector<2x1x128xf32> to vector<2x128xf32>
    %225 = vector.extract_strided_slice %8 {offsets = [0, 0, 128], sizes = [2, 1, 128], strides = [1, 1, 1]} : vector<2x8x256xf32> to vector<2x1x128xf32>
    %226 = vector.shape_cast %225 : vector<2x1x128xf32> to vector<2x128xf32>
    %227 = tpu.concatenate %224, %226 in 0 : vector<2x128xf32>, vector<2x128xf32> -> vector<4x128xf32>
    %228 = arith.truncf %221 : vector<4x32xf32> to vector<4x32xbf16>
    %229 = vector.extract_strided_slice %228 {offsets = [0, 0], sizes = [2, 32], strides = [1, 1]} : vector<4x32xbf16> to vector<2x32xbf16>
    %cst_34 = arith.constant dense<0.000000e+00> : vector<2x128xf32>
    %230 = tpu.matmul %229, %9, %cst_34 {dimension_numbers = #tpu.dot_dimension_numbers<[1], [0], [0], [1], [0, 0, 1, 1], [], []>} : vector<2x32xbf16>, vector<32x128xbf16>, vector<2x128xf32> -> vector<2x128xf32>
    %231 = vector.extract_strided_slice %228 {offsets = [2, 0], sizes = [2, 32], strides = [1, 1]} : vector<4x32xbf16> to vector<2x32xbf16>
    %cst_35 = arith.constant dense<0.000000e+00> : vector<2x128xf32>
    %232 = tpu.matmul %231, %10, %cst_35 {dimension_numbers = #tpu.dot_dimension_numbers<[1], [0], [0], [1], [0, 0, 1, 1], [], []>} : vector<2x32xbf16>, vector<32x128xbf16>, vector<2x128xf32> -> vector<2x128xf32>
    %233 = tpu.concatenate %230, %232 in 0 : vector<2x128xf32>, vector<2x128xf32> -> vector<4x128xf32>
    %234 = arith.addf %227, %233 : vector<4x128xf32>
    %235 = math.tanh %234 : vector<4x128xf32>
    %236 = arith.negf %234 : vector<4x128xf32>
    %237 = math.exp %236 : vector<4x128xf32>
    %cst_36 = arith.constant 1.000000e+00 : f32
    %238 = vector.broadcast %cst_36 : f32 to vector<4x128xf32>
    %239 = arith.addf %238, %237 : vector<4x128xf32>
    %240 = arith.divf %238, %239 : vector<4x128xf32>
    %241 = arith.select %16, %235, %240 : vector<4x128xi1>, vector<4x128xf32>
    %242 = vector.extract_strided_slice %241 {offsets = [0, 0], sizes = [4, 32], strides = [1, 1]} : vector<4x128xf32> to vector<4x32xf32>
    %243 = vector.extract_strided_slice %241 {offsets = [0, 32], sizes = [4, 32], strides = [1, 1]} : vector<4x128xf32> to vector<4x32xf32>
    %244 = vector.extract_strided_slice %241 {offsets = [0, 64], sizes = [4, 32], strides = [1, 1]} : vector<4x128xf32> to vector<4x32xf32>
    %245 = vector.extract_strided_slice %241 {offsets = [0, 96], sizes = [4, 32], strides = [1, 1]} : vector<4x128xf32> to vector<4x32xf32>
    %246 = arith.mulf %243, %219 : vector<4x32xf32>
    %247 = arith.mulf %242, %244 : vector<4x32xf32>
    %248 = arith.addf %246, %247 : vector<4x32xf32>
    %249 = math.tanh %248 : vector<4x32xf32>
    %250 = arith.mulf %245, %249 : vector<4x32xf32>
    %251 = arith.addf %222, %250 : vector<4x32xf32>
    %252 = arith.truncf %251 : vector<4x32xf32> to vector<4x32xbf16>
    %253 = vector.extract_strided_slice %252 {offsets = [0, 0], sizes = [2, 32], strides = [1, 1]} : vector<4x32xbf16> to vector<2x32xbf16>
    %c0_37 = arith.constant 0 : index
    %c0_38 = arith.constant 0 : index
    %254 = vector.load %arg5[%c0_37, %c0_38] : memref<32x32xbf16, #tpu.memory_space<vmem>>, vector<32x32xbf16>
    %cst_39 = arith.constant dense<0.000000e+00> : vector<2x32xf32>
    %255 = tpu.matmul %253, %254, %cst_39 {dimension_numbers = #tpu.dot_dimension_numbers<[1], [0], [0], [1], [0, 0, 1, 1], [], []>} : vector<2x32xbf16>, vector<32x32xbf16>, vector<2x32xf32> -> vector<2x32xf32>
    %256 = vector.extract_strided_slice %252 {offsets = [2, 0], sizes = [2, 32], strides = [1, 1]} : vector<4x32xbf16> to vector<2x32xbf16>
    %c0_40 = arith.constant 0 : index
    %c0_41 = arith.constant 0 : index
    %257 = vector.load %arg6[%c0_40, %c0_41] : memref<32x32xbf16, #tpu.memory_space<vmem>>, vector<32x32xbf16>
    %cst_42 = arith.constant dense<0.000000e+00> : vector<2x32xf32>
    %258 = tpu.matmul %256, %257, %cst_42 {dimension_numbers = #tpu.dot_dimension_numbers<[1], [0], [0], [1], [0, 0, 1, 1], [], []>} : vector<2x32xbf16>, vector<32x32xbf16>, vector<2x32xf32> -> vector<2x32xf32>
    %259 = arith.addf %255, %258 : vector<2x32xf32>
    %c0_43 = arith.constant 0 : index
    %c0_44 = arith.constant 0 : index
    %260 = vector.load %arg7[%c0_43, %c0_44] : memref<1x32xf32, #tpu.memory_space<vmem>>, vector<1x32xf32>
    %261 = vector.broadcast %260 : vector<1x32xf32> to vector<2x32xf32>
    %262 = arith.addf %259, %261 : vector<2x32xf32>
    %263 = math.tanh %262 : vector<2x32xf32>
    %264 = arith.truncf %263 : vector<2x32xf32> to vector<2x32xbf16>
    %c0_45 = arith.constant 0 : index
    %c0_46 = arith.constant 0 : index
    %265 = vector.load %arg8[%c0_45, %c0_46] : memref<32x32xbf16, #tpu.memory_space<vmem>>, vector<32x32xbf16>
    %cst_47 = arith.constant dense<0.000000e+00> : vector<2x32xf32>
    %266 = tpu.matmul %264, %265, %cst_47 {dimension_numbers = #tpu.dot_dimension_numbers<[1], [0], [0], [1], [0, 0, 1, 1], [], []>} : vector<2x32xbf16>, vector<32x32xbf16>, vector<2x32xf32> -> vector<2x32xf32>
    %c0_48 = arith.constant 0 : index
    %c0_49 = arith.constant 0 : index
    %267 = vector.load %arg9[%c0_48, %c0_49] : memref<1x32xf32, #tpu.memory_space<vmem>>, vector<1x32xf32>
    %268 = vector.broadcast %267 : vector<1x32xf32> to vector<2x32xf32>
    %269 = arith.addf %266, %268 : vector<2x32xf32>
    %270 = math.tanh %269 : vector<2x32xf32>
    %271 = arith.mulf %270, %270 : vector<2x32xf32>
    %cst_50 = arith.constant dense<0.000000e+00> : vector<2xf32>
    %272 = vector.multi_reduction <add>, %271, %cst_50 [1] : vector<2x32xf32> to vector<2xf32>
    %273 = vector.shape_cast %272 : vector<2xf32> to vector<2x1xf32>
    %cst_51 = arith.constant 9.99999996E-13 : f32
    %274 = vector.broadcast %cst_51 : f32 to vector<2x1xf32>
    %275 = arith.addf %273, %274 : vector<2x1xf32>
    %276 = math.rsqrt %275 : vector<2x1xf32>
    %277 = vector.broadcast %276 : vector<2x1xf32> to vector<2x32xf32>
    %278 = arith.mulf %270, %277 : vector<2x32xf32>
    %c0_52 = arith.constant 0 : index
    %c0_53 = arith.constant 0 : index
    %279 = vector.load %arg10[%c0_52, %c0_53] : memref<2x32xf32, #tpu.memory_space<vmem>>, vector<2x32xf32>
    tpu.vector_store %arg10[%c0_52, %c0_53], %278 {strides = array<i32>} : memref<2x32xf32, #tpu.memory_space<vmem>>, vector<2x32xf32>,
    return
  }
}

</mosaic_0001>

<llo_original>
// kernel: tpu_custom_call.1
$region0: #{tpu_custom_call.1}
  #allocation0 [shape = 'u32[]', space=smem, size = 0x4, offset = 0x4, fixed_abs, tag = 'smem constant byte address 0x4 - core index']
  #allocation1 [shape = 'u32[144,128]{1,0:T(1,128)}', space=vmem, size = 0x12000, scoped, tag = 'internal scratch']
  %s0 = inlined_call_operand.hbm [shape: f32[2,8,16], index: 0, kind: input, shape index: {}]
  %s1 = inlined_call_operand.hbm [shape: bf16[16,256], index: 1, kind: input, shape index: {}]
  %s2 = inlined_call_operand.vmem [shape: f32[1,256], index: 2, kind: input, shape index: {}]
  %s3 = inlined_call_operand.hbm [shape: bf16[32,128], index: 3, kind: input, shape index: {}]
  %s4 = inlined_call_operand.hbm [shape: bf16[32,128], index: 4, kind: input, shape index: {}]
  %s5 = inlined_call_operand.hbm [shape: bf16[32,32], index: 5, kind: input, shape index: {}]
  %s6 = inlined_call_operand.hbm [shape: bf16[32,32], index: 6, kind: input, shape index: {}]
  %s7 = inlined_call_operand.vmem [shape: f32[1,32], index: 7, kind: input, shape index: {}]
  %s8 = inlined_call_operand.hbm [shape: bf16[32,32], index: 8, kind: input, shape index: {}]
  %s9 = inlined_call_operand.vmem [shape: f32[1,32], index: 9, kind: input, shape index: {}]
  %s10 = inlined_call_operand.hbm [shape: f32[2,32], index: 10, kind: output, shape index: {}]
  %s11 = sld [smem:[#allocation0]]
  $region78: #{tpu_custom_call.1} parent=0
    _
  %s13 = ssub.s32 1, %s11
  %s14 = scalar_select 0, %s13, %s11
  $region1: #{tpu_custom_call.1} parent=0
    #allocation2 [shape = 'u8[8192]{0}', space=vmem, size = 0x2000, scoped, tag = 'input window, operand 0, single buffered']
    #allocation3 [shape = 's32[1]{0}', space=sflag, size = 0x4, scoped, tag = 'scoped memory for tpu_custom_call.1']
    #allocation4 [shape = 's32[1]{0}', space=sflag, size = 0x4, scoped, tag = 'scoped memory for tpu_custom_call.1']
    #allocation5 [shape = 'u8[8192]{0}', space=vmem, size = 0x2000, scoped, tag = 'input window, operand 1, single buffered']
    #allocation6 [shape = 's32[1]{0}', space=sflag, size = 0x4, scoped, tag = 'scoped memory for tpu_custom_call.1']
    #allocation7 [shape = 'u8[8192]{0}', space=vmem, size = 0x2000, scoped, tag = 'input window, operand 3, single buffered']
    #allocation8 [shape = 'u8[8192]{0}', space=vmem, size = 0x2000, scoped, tag = 'input window, operand 4, single buffered']
    #allocation9 [shape = 's32[1]{0}', space=sflag, size = 0x4, scoped, tag = 'scoped memory for tpu_custom_call.1']
    #allocation10 [shape = 'u8[8192]{0}', space=vmem, size = 0x2000, scoped, tag = 'input window, operand 5, single buffered']
    #allocation11 [shape = 'u8[8192]{0}', space=vmem, size = 0x2000, scoped, tag = 'input window, operand 6, single buffered']
    #allocation12 [shape = 's32[1]{0}', space=sflag, size = 0x4, scoped, tag = 'scoped memory for tpu_custom_call.1']
    #allocation13 [shape = 'u8[8192]{0}', space=vmem, size = 0x2000, scoped, tag = 'input window, operand 8, single buffered']
    #allocation14 [shape = 'u8[1024]{0}', space=vmem, size = 0x400, scoped, tag = 'output window, operand 0, single buffered']
    %15 = vsyncpa [#allocation3], 0
    %16 = vsyncpa [#allocation6], 0
    %17 = vsyncpa [#allocation9], 0
    %18 = vsyncpa [#allocation12], 0
    %19 = vsyncpa [#allocation4], 0
    // Predicated region
    $region2: #{tpu_custom_call.1} parent=1 // pred_check
      _
    $region3: #{tpu_custom_call.1} parent=1 // pred_check_branch
      %21 = sbr.rel (0) target = $region5
    $region4: #{tpu_custom_call.1} parent=1 // pred_region
      %s23 = ssub.s32 256, 256
      %24 = vsyncadd [#allocation3], %s23
      %s25 = sshll.u32 [#allocation2], 4
      %s26 = int_to_ptr.vmem [resolvable:$true] %s25
      %31 = dma.hbm_to_vmem [thread:$0]  %s0, 256, %s26, [#allocation3], 128, 128, 8
    $region5: #{tpu_custom_call.1} parent=1 // pred_fallthru
      _
    // Predicated region
    $region6: #{tpu_custom_call.1} parent=1 // pred_check
      _
    $region7: #{tpu_custom_call.1} parent=1 // pred_check_branch
      %33 = sbr.rel (0) target = $region9
    $region8: #{tpu_custom_call.1} parent=1 // pred_region
      %s35 = ssub.s32 256, 256
      %36 = vsyncadd [#allocation6], %s35
      %s37 = sshll.u32 [#allocation5], 4
      %s38 = int_to_ptr.vmem [resolvable:$true] %s37
      %43 = dma.hbm_to_vmem [thread:$0]  %s1, 256, %s38, [#allocation6], 128, 128, 8
    $region9: #{tpu_custom_call.1} parent=1 // pred_fallthru
      _
    // Predicated region
    $region10: #{tpu_custom_call.1} parent=1 // pred_check
      _
    $region11: #{tpu_custom_call.1} parent=1 // pred_check_branch
      %45 = sbr.rel (0) target = $region13
    $region12: #{tpu_custom_call.1} parent=1 // pred_region
      _
    $region13: #{tpu_custom_call.1} parent=1 // pred_fallthru
      _
    // Predicated region
    $region14: #{tpu_custom_call.1} parent=1 // pred_check
      _
    $region15: #{tpu_custom_call.1} parent=1 // pred_check_branch
      %47 = sbr.rel (0) target = $region17
    $region16: #{tpu_custom_call.1} parent=1 // pred_region
      %s49 = ssub.s32 256, 256
      %50 = vsyncadd [#allocation6], %s49
      %s51 = sshll.u32 [#allocation7], 4
      %s52 = int_to_ptr.vmem [resolvable:$true] %s51
      %57 = dma.hbm_to_vmem [thread:$0]  %s3, 256, %s52, [#allocation6], 64, 64, 4
    $region17: #{tpu_custom_call.1} parent=1 // pred_fallthru
      _
    // Predicated region
    $region18: #{tpu_custom_call.1} parent=1 // pred_check
      _
    $region19: #{tpu_custom_call.1} parent=1 // pred_check_branch
      %59 = sbr.rel (0) target = $region21
    $region20: #{tpu_custom_call.1} parent=1 // pred_region
      %s61 = ssub.s32 256, 256
      %62 = vsyncadd [#allocation9], %s61
      %s63 = sshll.u32 [#allocation8], 4
      %s64 = int_to_ptr.vmem [resolvable:$true] %s63
      %69 = dma.hbm_to_vmem [thread:$0]  %s4, 256, %s64, [#allocation9], 64, 64, 4
    $region21: #{tpu_custom_call.1} parent=1 // pred_fallthru
      _
    // Predicated region
    $region22: #{tpu_custom_call.1} parent=1 // pred_check
      _
    $region23: #{tpu_custom_call.1} parent=1 // pred_check_branch
      %71 = sbr.rel (0) target = $region25
    $region24: #{tpu_custom_call.1} parent=1 // pred_region
      %s73 = ssub.s32 256, 256
      %74 = vsyncadd [#allocation9], %s73
      %s75 = sshll.u32 [#allocation10], 4
      %s76 = int_to_ptr.vmem [resolvable:$true] %s75
      %81 = dma.hbm_to_vmem [thread:$0]  %s5, 256, %s76, [#allocation9], 64, 64, 4
    $region25: #{tpu_custom_call.1} parent=1 // pred_fallthru
      _
    // Predicated region
    $region26: #{tpu_custom_call.1} parent=1 // pred_check
      _
    $region27: #{tpu_custom_call.1} parent=1 // pred_check_branch
      %83 = sbr.rel (0) target = $region29
    $region28: #{tpu_custom_call.1} parent=1 // pred_region
      %s85 = ssub.s32 256, 256
      %86 = vsyncadd [#allocation12], %s85
      %s87 = sshll.u32 [#allocation11], 4
      %s88 = int_to_ptr.vmem [resolvable:$true] %s87
      %93 = dma.hbm_to_vmem [thread:$0]  %s6, 256, %s88, [#allocation12], 64, 64, 4
    $region29: #{tpu_custom_call.1} parent=1 // pred_fallthru
      _
    // Predicated region
    $region30: #{tpu_custom_call.1} parent=1 // pred_check
      _
    $region31: #{tpu_custom_call.1} parent=1 // pred_check_branch
      %95 = sbr.rel (0) target = $region33
    $region32: #{tpu_custom_call.1} parent=1 // pred_region
      _
    $region33: #{tpu_custom_call.1} parent=1 // pred_fallthru
      _
    // Predicated region
    $region34: #{tpu_custom_call.1} parent=1 // pred_check
      _
    $region35: #{tpu_custom_call.1} parent=1 // pred_check_branch
      %97 = sbr.rel (0) target = $region37
    $region36: #{tpu_custom_call.1} parent=1 // pred_region
      %s99 = ssub.s32 256, 256
      %100 = vsyncadd [#allocation12], %s99
      %s101 = sshll.u32 [#allocation13], 4
      %s102 = int_to_ptr.vmem [resolvable:$true] %s101
      %107 = dma.hbm_to_vmem [thread:$0]  %s8, 256, %s102, [#allocation12], 64, 64, 4
    $region37: #{tpu_custom_call.1} parent=1 // pred_fallthru
      _
    // Predicated region
    $region38: #{tpu_custom_call.1} parent=1 // pred_check
      _
    $region39: #{tpu_custom_call.1} parent=1 // pred_check_branch
      %109 = sbr.rel (0) target = $region41
    $region40: #{tpu_custom_call.1} parent=1 // pred_region
      _
    $region41: #{tpu_custom_call.1} parent=1 // pred_fallthru
      _
    // Predicated region
    $region42: #{tpu_custom_call.1} parent=1 // pred_check
      _
    $region43: #{tpu_custom_call.1} parent=1 // pred_check_branch
      %111 = sbr.rel (0) target = $region45
    $region44: #{tpu_custom_call.1} parent=1 // pred_region
      %112 = dma.done [#allocation3], 256
    $region45: #{tpu_custom_call.1} parent=1 // pred_fallthru
      _
    // Predicated region
    $region46: #{tpu_custom_call.1} parent=1 // pred_check
      _
    $region47: #{tpu_custom_call.1} parent=1 // pred_check_branch
      %114 = sbr.rel (0) target = $region49
    $region48: #{tpu_custom_call.1} parent=1 // pred_region
      %115 = dma.done [#allocation6], 256
    $region49: #{tpu_custom_call.1} parent=1 // pred_fallthru
      _
    // Predicated region
    $region50: #{tpu_custom_call.1} parent=1 // pred_check
      _
    $region51: #{tpu_custom_call.1} parent=1 // pred_check_branch
      %117 = sbr.rel (0) target = $region53
    $region52: #{tpu_custom_call.1} parent=1 // pred_region
      %118 = dma.done [#allocation6], 256
    $region53: #{tpu_custom_call.1} parent=1 // pred_fallthru
      _
    // Predicated region
    $region54: #{tpu_custom_call.1} parent=1 // pred_check
      _
    $region55: #{tpu_custom_call.1} parent=1 // pred_check_branch
      %120 = sbr.rel (0) target = $region57
    $region56: #{tpu_custom_call.1} parent=1 // pred_region
      %121 = dma.done [#allocation9], 256
    $region57: #{tpu_custom_call.1} parent=1 // pred_fallthru
      _
    // Predicated region
    $region58: #{tpu_custom_call.1} parent=1 // pred_check
      _
    $region59: #{tpu_custom_call.1} parent=1 // pred_check_branch
      %123 = sbr.rel (0) target = $region61
    $region60: #{tpu_custom_call.1} parent=1 // pred_region
      %124 = dma.done [#allocation9], 256
    $region61: #{tpu_custom_call.1} parent=1 // pred_fallthru
      _
    // Predicated region
    $region62: #{tpu_custom_call.1} parent=1 // pred_check
      _
    $region63: #{tpu_custom_call.1} parent=1 // pred_check_branch
      %126 = sbr.rel (0) target = $region65
    $region64: #{tpu_custom_call.1} parent=1 // pred_region
      %127 = dma.done [#allocation12], 256
    $region65: #{tpu_custom_call.1} parent=1 // pred_fallthru
      _
    // Predicated region
    $region66: #{tpu_custom_call.1} parent=1 // pred_check
      _
    $region67: #{tpu_custom_call.1} parent=1 // pred_check_branch
      %129 = sbr.rel (0) target = $region69
    $region68: #{tpu_custom_call.1} parent=1 // pred_region
      %130 = dma.done [#allocation12], 256
    $region69: #{tpu_custom_call.1} parent=1 // pred_fallthru
      _
    %v132 = vld [vmem:[#allocation2] sm:$0xff]
    %v133 = vld [vmem:[#allocation2 + $0x8] sm:$0xff]
    %v134 = vpack.c.bf16 %v133, %v132
    %v135 = vld [vmem:[#allocation5] sm:$0xff]
    %v136 = vld [vmem:[#allocation5 + $0x8] sm:$0xff]
    %v137 = vld [vmem:[%s2] sm:$0x3]
    %v139 = vlaneseq
    %v140 = vshrl.u32 %v139, 7
    %v141 = vsub.s32 0, %v140
    %v142 = vrot.slane %v137, %v141
    %v143 = vlaneseq
    %v144 = vshrl.u32 %v143, 7
    %v145 = vsub.s32 1, %v144
    %v146 = vrot.slane %v137, %v145
    %v151 = vunpack.c.l.b16 %v135
    %v152 = vunpack.c.h.b16 %v135
    %v153 = vunpack.c.l.b16 %v136
    %v154 = vunpack.c.h.b16 %v136
    %v155 = vpack.c.b16 %v153, %v151
    %v156 = vpack.c.b16 %v154, %v152
    %vm159 = vcmask 130048
    %v161 = vsel %vm159, %v134, 0
    %163 = vmatprep.subr.bf16.mxu0 0
    %164 = vmatpush1.bf16.msra.mxu0 0
    %165 = vmatprep.subr.bf16.mxu0 0
    %166 = vmatpush1.bf16.msra.mxu0 0
    %167 = vmatprep.subr.bf16.mxu0 0
    %168 = vmatpush1.bf16.msra.mxu0 0
    %169 = vmatprep.subr.bf16.mxu0 0
    %170 = vmatpush1.bf16.msra.mxu0 0
    %171 = vmatprep.subr.bf16.mxu0 0
    %172 = vmatpush1.bf16.msra.mxu0 0
    %173 = vmatprep.subr.bf16.mxu0 0
    %174 = vmatpush1.bf16.msra.mxu0 0
    %175 = vmatprep.subr.bf16.mxu0 0
    %176 = vmatpush1.bf16.msra.mxu0 0
    %177 = vmatprep.subr.bf16.mxu0 %v156
    %178 = vmatpush1.bf16.msra.mxu0 %v155
    %179 = vmatprep.subr.bf16.mxu0 0
    %180 = vmatpush2.bf16.msra.mxu0 0
    %181 = vmatprep.subr.bf16.mxu0 0
    %182 = vmatpush2.bf16.msra.mxu0 0
    %183 = vmatprep.subr.bf16.mxu0 0
    %184 = vmatpush2.bf16.msra.mxu0 0
    %185 = vmatprep.subr.bf16.mxu0 0
    %186 = vmatpush2.bf16.msra.mxu0 0
    %187 = vmatprep.subr.bf16.mxu0 0
    %188 = vmatpush2.bf16.msra.mxu0 0
    %189 = vmatprep.subr.bf16.mxu0 0
    %190 = vmatpush2.bf16.msra.mxu0 0
    %191 = vmatprep.subr.bf16.mxu0 0
    %192 = vmatpush2.bf16.msra.mxu0 0
    %193 = vmatprep.subr.bf16.mxu0 0
    %194 = vmatpush2.bf16.msra.mxu0 0
    %195 = vmatprep.mubr.bf16.mxu0 0
    %196 = vmatmul.mubr.bf16.gmra.mxu0 %v161
    %v197 = vpop.f32.mrf.mxu0
    %v198 = vadd.f32 %v142, %v197
    %v199 = vpop.f32.mrf.mxu0
    %v200 = vadd.f32 %v146, %v199
    %v201 = vpop.f32.mrf.mxu0
    %v202 = vadd.f32 %v142, %v201
    %v203 = vpop.f32.mrf.mxu0
    %v204 = vadd.f32 %v146, %v203
    %205 = vdwg.mxu0
    %v206 = vld [vmem:[#allocation7] sm:$0xf]
    %v207 = vld [vmem:[#allocation7 + $0x4] sm:$0xf]
    %v208 = vld [vmem:[#allocation7 + $0x8] sm:$0xf]
    %v209 = vld [vmem:[#allocation7 + $0xc] sm:$0xf]
    %v210 = vld [vmem:[#allocation8] sm:$0xf]
    %v211 = vld [vmem:[#allocation8 + $0x4] sm:$0xf]
    %v212 = vld [vmem:[#allocation8 + $0x8] sm:$0xf]
    %v213 = vld [vmem:[#allocation8 + $0xc] sm:$0xf]
    %v214 = vlaneseq
    %v215 = vand.u32 %v214, 127
    %vm216 = vcmp.ge.s32.totalorder %v215, 64
    %vm217 = vcmp.lt.s32.totalorder %v215, 96
    %vm218 = vmand %vm216, %vm217
    %v221 = vrot.slane %v202, 7
    %vm222 = vcmask 1041409
    %v223 = vsel %vm222, %v221, %v198
    %v227 = vrot.slane %v200, 5
    %v228 = vrot.slane %v204, 4
    %vm229 = vcmask 1043459
    %v230 = vsel %vm229, %v228, %v227
    %vm232 = vcmask 1041408
    %v233 = vsel %vm232, %v223, %v230
    %v238 = vunpack.c.l.b16 %v206
    %v239 = vunpack.c.l.b16 %v207
    %v240 = vunpack.c.l.b16 %v208
    %v241 = vunpack.c.l.b16 %v209
    %v242 = vpack.c.b16 %v239, %v238
    %v243 = vpack.c.b16 %v241, %v240
    %vm246 = vcmask 261120
    %v248 = vsel %vm246, 0, 0
    %250 = vmatprep.subr.bf16.mxu0 0
    %251 = vmatpush1.bf16.msra.mxu0 0
    %252 = vmatprep.subr.bf16.mxu0 0
    %253 = vmatpush1.bf16.msra.mxu0 0
    %254 = vmatprep.subr.bf16.mxu0 0
    %255 = vmatpush1.bf16.msra.mxu0 0
    %256 = vmatprep.subr.bf16.mxu0 0
    %257 = vmatpush1.bf16.msra.mxu0 0
    %258 = vmatprep.subr.bf16.mxu0 0
    %259 = vmatpush1.bf16.msra.mxu0 0
    %260 = vmatprep.subr.bf16.mxu0 0
    %261 = vmatpush1.bf16.msra.mxu0 0
    %262 = vmatprep.subr.bf16.mxu0 0
    %263 = vmatpush1.bf16.msra.mxu0 %v243
    %264 = vmatprep.subr.bf16.mxu0 0
    %265 = vmatpush1.bf16.msra.mxu0 %v242
    %266 = vmatprep.subr.bf16.mxu0 0
    %267 = vmatpush2.bf16.msra.mxu0 0
    %268 = vmatprep.subr.bf16.mxu0 0
    %269 = vmatpush2.bf16.msra.mxu0 0
    %270 = vmatprep.subr.bf16.mxu0 0
    %271 = vmatpush2.bf16.msra.mxu0 0
    %272 = vmatprep.subr.bf16.mxu0 0
    %273 = vmatpush2.bf16.msra.mxu0 0
    %274 = vmatprep.subr.bf16.mxu0 0
    %275 = vmatpush2.bf16.msra.mxu0 0
    %276 = vmatprep.subr.bf16.mxu0 0
    %277 = vmatpush2.bf16.msra.mxu0 0
    %278 = vmatprep.subr.bf16.mxu0 0
    %279 = vmatpush2.bf16.msra.mxu0 0
    %280 = vmatprep.subr.bf16.mxu0 0
    %281 = vmatpush2.bf16.msra.mxu0 0
    %282 = vmatprep.mubr.bf16.mxu0 0
    %283 = vmatmul.mubr.bf16.gmra.mxu0 %v248
    %v284 = vpop.f32.mrf.mxu0
    %v285 = vadd.f32 0.0, %v284
    %v286 = vpop.f32.mrf.mxu0
    %v287 = vpop.f32.mrf.mxu0
    %v288 = vpop.f32.mrf.mxu0
    %289 = vdwg.mxu0
    %v294 = vunpack.c.l.b16 %v210
    %v295 = vunpack.c.l.b16 %v211
    %v296 = vunpack.c.l.b16 %v212
    %v297 = vunpack.c.l.b16 %v213
    %v298 = vpack.c.b16 %v295, %v294
    %v299 = vpack.c.b16 %v297, %v296
    %302 = vmatprep.subr.bf16.mxu0 0
    %303 = vmatpush1.bf16.msra.mxu0 0
    %304 = vmatprep.subr.bf16.mxu0 0
    %305 = vmatpush1.bf16.msra.mxu0 0
    %306 = vmatprep.subr.bf16.mxu0 0
    %307 = vmatpush1.bf16.msra.mxu0 0
    %308 = vmatprep.subr.bf16.mxu0 0
    %309 = vmatpush1.bf16.msra.mxu0 0
    %310 = vmatprep.subr.bf16.mxu0 0
    %311 = vmatpush1.bf16.msra.mxu0 0
    %312 = vmatprep.subr.bf16.mxu0 0
    %313 = vmatpush1.bf16.msra.mxu0 0
    %314 = vmatprep.subr.bf16.mxu0 0
    %315 = vmatpush1.bf16.msra.mxu0 %v299
    %316 = vmatprep.subr.bf16.mxu0 0
    %317 = vmatpush1.bf16.msra.mxu0 %v298
    %318 = vmatprep.subr.bf16.mxu0 0
    %319 = vmatpush2.bf16.msra.mxu0 0
    %320 = vmatprep.subr.bf16.mxu0 0
    %321 = vmatpush2.bf16.msra.mxu0 0
    %322 = vmatprep.subr.bf16.mxu0 0
    %323 = vmatpush2.bf16.msra.mxu0 0
    %324 = vmatprep.subr.bf16.mxu0 0
    %325 = vmatpush2.bf16.msra.mxu0 0
    %326 = vmatprep.subr.bf16.mxu0 0
    %327 = vmatpush2.bf16.msra.mxu0 0
    %328 = vmatprep.subr.bf16.mxu0 0
    %329 = vmatpush2.bf16.msra.mxu0 0
    %330 = vmatprep.subr.bf16.mxu0 0
    %331 = vmatpush2.bf16.msra.mxu0 0
    %332 = vmatprep.subr.bf16.mxu0 0
    %333 = vmatpush2.bf16.msra.mxu0 0
    %334 = vmatprep.mubr.bf16.mxu0 0
    %335 = vmatmul.mubr.bf16.gmra.mxu0 %v248
    %v336 = vpop.f32.mrf.mxu0
    %v337 = vadd.f32 0.0, %v336
    %v338 = vpop.f32.mrf.mxu0
    %v339 = vpop.f32.mrf.mxu0
    %v340 = vpop.f32.mrf.mxu0
    %341 = vdwg.mxu0
    %v343 = vrot.slane %v337, 6
    %v345 = vsel %vm232, %v285, %v343
    %v346 = vadd.f32 %v233, %v345
    %v347 = vtanh.pop %v346
    %v348 = vxor.u32 %v346, 2147483648
    %v349 = vmul.f32 %v348, 1.442695
    %v350 = vpow.pop %v349
    %v351 = vadd.f32 %v350, 1.0
    %v352 = vrcp.pop %v351
    %v353 = vmul.f32 1.0, %v352
    %v354 = vsel %vm218, %v347, %v353
    %v355 = vmul.f32 %v354, 0.0
    %357 = vrot.lane.b32.xlu0 %v354, 64
    %v358 = vpop.permute.xlu0 %357
    %v360 = vmul.f32 %v354, %v358
    %362 = vrot.lane.b32.xlu0 %v360, 32
    %v363 = vpop.permute.xlu0 %362
    %v365 = vadd.f32 %v355, %v363
    %v366 = vtanh.pop %v365
    %368 = vrot.lane.b32.xlu0 %v366, 64
    %v369 = vpop.permute.xlu0 %368
    %v371 = vmul.f32 %v354, %v369
    %v372 = vadd.f32 %v371, 0.0
    %v373 = vrot.slane %v198, 1
    %v374 = vsel %vm222, %v202, %v373
    %v376 = vrot.slane %v200, 4
    %v377 = vrot.slane %v204, 3
    %v378 = vsel %vm229, %v377, %v376
    %v380 = vsel %vm232, %v374, %v378
    %v381 = vpack.c.bf16 %v371, %v371
    %383 = vrot.lane.b32.xlu0 %v381, 32
    %v384 = vpop.permute.xlu0 %383
    %v386 = vsel %vm246, %v384, 0
    %388 = vmatprep.subr.bf16.mxu0 0
    %389 = vmatpush1.bf16.msra.mxu0 0
    %390 = vmatprep.subr.bf16.mxu0 0
    %391 = vmatpush1.bf16.msra.mxu0 0
    %392 = vmatprep.subr.bf16.mxu0 0
    %393 = vmatpush1.bf16.msra.mxu0 0
    %394 = vmatprep.subr.bf16.mxu0 0
    %395 = vmatpush1.bf16.msra.mxu0 0
    %396 = vmatprep.subr.bf16.mxu0 0
    %397 = vmatpush1.bf16.msra.mxu0 0
    %398 = vmatprep.subr.bf16.mxu0 0
    %399 = vmatpush1.bf16.msra.mxu0 0
    %400 = vmatprep.subr.bf16.mxu0 0
    %401 = vmatpush1.bf16.msra.mxu0 %v243
    %402 = vmatprep.subr.bf16.mxu0 0
    %403 = vmatpush1.bf16.msra.mxu0 %v242
    %404 = vmatprep.subr.bf16.mxu0 0
    %405 = vmatpush2.bf16.msra.mxu0 0
    %406 = vmatprep.subr.bf16.mxu0 0
    %407 = vmatpush2.bf16.msra.mxu0 0
    %408 = vmatprep.subr.bf16.mxu0 0
    %409 = vmatpush2.bf16.msra.mxu0 0
    %410 = vmatprep.subr.bf16.mxu0 0
    %411 = vmatpush2.bf16.msra.mxu0 0
    %412 = vmatprep.subr.bf16.mxu0 0
    %413 = vmatpush2.bf16.msra.mxu0 0
    %414 = vmatprep.subr.bf16.mxu0 0
    %415 = vmatpush2.bf16.msra.mxu0 0
    %416 = vmatprep.subr.bf16.mxu0 0
    %417 = vmatpush2.bf16.msra.mxu0 0
    %418 = vmatprep.subr.bf16.mxu0 0
    %419 = vmatpush2.bf16.msra.mxu0 0
    %420 = vmatprep.mubr.bf16.mxu0 0
    %421 = vmatmul.mubr.bf16.gmra.mxu0 %v386
    %v422 = vpop.f32.mrf.mxu0
    %v423 = vadd.f32 0.0, %v422
    %v424 = vpop.f32.mrf.mxu0
    %v425 = vpop.f32.mrf.mxu0
    %v426 = vpop.f32.mrf.mxu0
    %427 = vdwg.mxu0
    %v428 = vrot.slane %v381, 1
    %429 = vrot.lane.b32.xlu0 %v428, 32
    %v430 = vpop.permute.xlu0 %429
    %v432 = vsel %vm246, %v430, 0
    %434 = vmatprep.subr.bf16.mxu0 0
    %435 = vmatpush1.bf16.msra.mxu0 0
    %436 = vmatprep.subr.bf16.mxu0 0
    %437 = vmatpush1.bf16.msra.mxu0 0
    %438 = vmatprep.subr.bf16.mxu0 0
    %439 = vmatpush1.bf16.msra.mxu0 0
    %440 = vmatprep.subr.bf16.mxu0 0
    %441 = vmatpush1.bf16.msra.mxu0 0
    %442 = vmatprep.subr.bf16.mxu0 0
    %443 = vmatpush1.bf16.msra.mxu0 0
    %444 = vmatprep.subr.bf16.mxu0 0
    %445 = vmatpush1.bf16.msra.mxu0 0
    %446 = vmatprep.subr.bf16.mxu0 0
    %447 = vmatpush1.bf16.msra.mxu0 %v299
    %448 = vmatprep.subr.bf16.mxu0 0
    %449 = vmatpush1.bf16.msra.mxu0 %v298
    %450 = vmatprep.subr.bf16.mxu0 0
    %451 = vmatpush2.bf16.msra.mxu0 0
    %452 = vmatprep.subr.bf16.mxu0 0
    %453 = vmatpush2.bf16.msra.mxu0 0
    %454 = vmatprep.subr.bf16.mxu0 0
    %455 = vmatpush2.bf16.msra.mxu0 0
    %456 = vmatprep.subr.bf16.mxu0 0
    %457 = vmatpush2.bf16.msra.mxu0 0
    %458 = vmatprep.subr.bf16.mxu0 0
    %459 = vmatpush2.bf16.msra.mxu0 0
    %460 = vmatprep.subr.bf16.mxu0 0
    %461 = vmatpush2.bf16.msra.mxu0 0
    %462 = vmatprep.subr.bf16.mxu0 0
    %463 = vmatpush2.bf16.msra.mxu0 0
    %464 = vmatprep.subr.bf16.mxu0 0
    %465 = vmatpush2.bf16.msra.mxu0 0
    %466 = vmatprep.mubr.bf16.mxu0 0
    %467 = vmatmul.mubr.bf16.gmra.mxu0 %v432
    %v468 = vpop.f32.mrf.mxu0
    %v469 = vadd.f32 0.0, %v468
    %v470 = vpop.f32.mrf.mxu0
    %v471 = vpop.f32.mrf.mxu0
    %v472 = vpop.f32.mrf.mxu0
    %473 = vdwg.mxu0
    %v475 = vrot.slane %v469, 6
    %v477 = vsel %vm232, %v423, %v475
    %v478 = vadd.f32 %v380, %v477
    %v479 = vtanh.pop %v478
    %v480 = vxor.u32 %v478, 2147483648
    %v481 = vmul.f32 %v480, 1.442695
    %v482 = vpow.pop %v481
    %v483 = vadd.f32 %v482, 1.0
    %v484 = vrcp.pop %v483
    %v485 = vmul.f32 1.0, %v484
    %v486 = vsel %vm218, %v479, %v485
    %v487 = vmul.f32 %v486, %v365
    %489 = vrot.lane.b32.xlu0 %v486, 64
    %v490 = vpop.permute.xlu0 %489
    %v492 = vmul.f32 %v486, %v490
    %494 = vrot.lane.b32.xlu0 %v492, 32
    %v495 = vpop.permute.xlu0 %494
    %v497 = vadd.f32 %v487, %v495
    %v498 = vtanh.pop %v497
    %500 = vrot.lane.b32.xlu0 %v498, 64
    %v501 = vpop.permute.xlu0 %500
    %v503 = vmul.f32 %v486, %v501
    %v504 = vadd.f32 %v372, %v503
    %v505 = vrot.slane %v198, 2
    %v506 = vrot.slane %v202, 1
    %v507 = vsel %vm222, %v506, %v505
    %v509 = vrot.slane %v200, 3
    %v510 = vrot.slane %v204, 2
    %v511 = vsel %vm229, %v510, %v509
    %v513 = vsel %vm232, %v507, %v511
    %v514 = vpack.c.bf16 %v503, %v503
    %516 = vrot.lane.b32.xlu0 %v514, 32
    %v517 = vpop.permute.xlu0 %516
    %v519 = vsel %vm246, %v517, 0
    %521 = vmatprep.subr.bf16.mxu0 0
    %522 = vmatpush1.bf16.msra.mxu0 0
    %523 = vmatprep.subr.bf16.mxu0 0
    %524 = vmatpush1.bf16.msra.mxu0 0
    %525 = vmatprep.subr.bf16.mxu0 0
    %526 = vmatpush1.bf16.msra.mxu0 0
    %527 = vmatprep.subr.bf16.mxu0 0
    %528 = vmatpush1.bf16.msra.mxu0 0
    %529 = vmatprep.subr.bf16.mxu0 0
    %530 = vmatpush1.bf16.msra.mxu0 0
    %531 = vmatprep.subr.bf16.mxu0 0
    %532 = vmatpush1.bf16.msra.mxu0 0
    %533 = vmatprep.subr.bf16.mxu0 0
    %534 = vmatpush1.bf16.msra.mxu0 %v243
    %535 = vmatprep.subr.bf16.mxu0 0
    %536 = vmatpush1.bf16.msra.mxu0 %v242
    %537 = vmatprep.subr.bf16.mxu0 0
    %538 = vmatpush2.bf16.msra.mxu0 0
    %539 = vmatprep.subr.bf16.mxu0 0
    %540 = vmatpush2.bf16.msra.mxu0 0
    %541 = vmatprep.subr.bf16.mxu0 0
    %542 = vmatpush2.bf16.msra.mxu0 0
    %543 = vmatprep.subr.bf16.mxu0 0
    %544 = vmatpush2.bf16.msra.mxu0 0
    %545 = vmatprep.subr.bf16.mxu0 0
    %546 = vmatpush2.bf16.msra.mxu0 0
    %547 = vmatprep.subr.bf16.mxu0 0
    %548 = vmatpush2.bf16.msra.mxu0 0
    %549 = vmatprep.subr.bf16.mxu0 0
    %550 = vmatpush2.bf16.msra.mxu0 0
    %551 = vmatprep.subr.bf16.mxu0 0
    %552 = vmatpush2.bf16.msra.mxu0 0
    %553 = vmatprep.mubr.bf16.mxu0 0
    %554 = vmatmul.mubr.bf16.gmra.mxu0 %v519
    %v555 = vpop.f32.mrf.mxu0
    %v556 = vadd.f32 0.0, %v555
    %v557 = vpop.f32.mrf.mxu0
    %v558 = vpop.f32.mrf.mxu0
    %v559 = vpop.f32.mrf.mxu0
    %560 = vdwg.mxu0
    %v561 = vrot.slane %v514, 1
    %562 = vrot.lane.b32.xlu0 %v561, 32
    %v563 = vpop.permute.xlu0 %562
    %v565 = vsel %vm246, %v563, 0
    %567 = vmatprep.subr.bf16.mxu0 0
    %568 = vmatpush1.bf16.msra.mxu0 0
    %569 = vmatprep.subr.bf16.mxu0 0
    %570 = vmatpush1.bf16.msra.mxu0 0
    %571 = vmatprep.subr.bf16.mxu0 0
    %572 = vmatpush1.bf16.msra.mxu0 0
    %573 = vmatprep.subr.bf16.mxu0 0
    %574 = vmatpush1.bf16.msra.mxu0 0
    %575 = vmatprep.subr.bf16.mxu0 0
    %576 = vmatpush1.bf16.msra.mxu0 0
    %577 = vmatprep.subr.bf16.mxu0 0
    %578 = vmatpush1.bf16.msra.mxu0 0
    %579 = vmatprep.subr.bf16.mxu0 0
    %580 = vmatpush1.bf16.msra.mxu0 %v299
    %581 = vmatprep.subr.bf16.mxu0 0
    %582 = vmatpush1.bf16.msra.mxu0 %v298
    %583 = vmatprep.subr.bf16.mxu0 0
    %584 = vmatpush2.bf16.msra.mxu0 0
    %585 = vmatprep.subr.bf16.mxu0 0
    %586 = vmatpush2.bf16.msra.mxu0 0
    %587 = vmatprep.subr.bf16.mxu0 0
    %588 = vmatpush2.bf16.msra.mxu0 0
    %589 = vmatprep.subr.bf16.mxu0 0
    %590 = vmatpush2.bf16.msra.mxu0 0
    %591 = vmatprep.subr.bf16.mxu0 0
    %592 = vmatpush2.bf16.msra.mxu0 0
    %593 = vmatprep.subr.bf16.mxu0 0
    %594 = vmatpush2.bf16.msra.mxu0 0
    %595 = vmatprep.subr.bf16.mxu0 0
    %596 = vmatpush2.bf16.msra.mxu0 0
    %597 = vmatprep.subr.bf16.mxu0 0
    %598 = vmatpush2.bf16.msra.mxu0 0
    %599 = vmatprep.mubr.bf16.mxu0 0
    %600 = vmatmul.mubr.bf16.gmra.mxu0 %v565
    %v601 = vpop.f32.mrf.mxu0
    %v602 = vadd.f32 0.0, %v601
    %v603 = vpop.f32.mrf.mxu0
    %v604 = vpop.f32.mrf.mxu0
    %v605 = vpop.f32.mrf.mxu0
    %606 = vdwg.mxu0
    %v608 = vrot.slane %v602, 6
    %v610 = vsel %vm232, %v556, %v608
    %v611 = vadd.f32 %v513, %v610
    %v612 = vtanh.pop %v611
    %v613 = vxor.u32 %v611, 2147483648
    %v614 = vmul.f32 %v613, 1.442695
    %v615 = vpow.pop %v614
    %v616 = vadd.f32 %v615, 1.0
    %v617 = vrcp.pop %v616
    %v618 = vmul.f32 1.0, %v617
    %v619 = vsel %vm218, %v612, %v618
    %v620 = vmul.f32 %v619, %v497
    %622 = vrot.lane.b32.xlu0 %v619, 64
    %v623 = vpop.permute.xlu0 %622
    %v625 = vmul.f32 %v619, %v623
    %627 = vrot.lane.b32.xlu0 %v625, 32
    %v628 = vpop.permute.xlu0 %627
    %v630 = vadd.f32 %v620, %v628
    %v631 = vtanh.pop %v630
    %633 = vrot.lane.b32.xlu0 %v631, 64
    %v634 = vpop.permute.xlu0 %633
    %v636 = vmul.f32 %v619, %v634
    %v637 = vadd.f32 %v504, %v636
    %v638 = vrot.slane %v198, 3
    %v639 = vrot.slane %v202, 2
    %v640 = vsel %vm222, %v639, %v638
    %v642 = vrot.slane %v200, 2
    %v643 = vrot.slane %v204, 1
    %v644 = vsel %vm229, %v643, %v642
    %v646 = vsel %vm232, %v640, %v644
    %v647 = vpack.c.bf16 %v636, %v636
    %649 = vrot.lane.b32.xlu0 %v647, 32
    %v650 = vpop.permute.xlu0 %649
    %v652 = vsel %vm246, %v650, 0
    %654 = vmatprep.subr.bf16.mxu0 0
    %655 = vmatpush1.bf16.msra.mxu0 0
    %656 = vmatprep.subr.bf16.mxu0 0
    %657 = vmatpush1.bf16.msra.mxu0 0
    %658 = vmatprep.subr.bf16.mxu0 0
    %659 = vmatpush1.bf16.msra.mxu0 0
    %660 = vmatprep.subr.bf16.mxu0 0
    %661 = vmatpush1.bf16.msra.mxu0 0
    %662 = vmatprep.subr.bf16.mxu0 0
    %663 = vmatpush1.bf16.msra.mxu0 0
    %664 = vmatprep.subr.bf16.mxu0 0
    %665 = vmatpush1.bf16.msra.mxu0 0
    %666 = vmatprep.subr.bf16.mxu0 0
    %667 = vmatpush1.bf16.msra.mxu0 %v243
    %668 = vmatprep.subr.bf16.mxu0 0
    %669 = vmatpush1.bf16.msra.mxu0 %v242
    %670 = vmatprep.subr.bf16.mxu0 0
    %671 = vmatpush2.bf16.msra.mxu0 0
    %672 = vmatprep.subr.bf16.mxu0 0
    %673 = vmatpush2.bf16.msra.mxu0 0
    %674 = vmatprep.subr.bf16.mxu0 0
    %675 = vmatpush2.bf16.msra.mxu0 0
    %676 = vmatprep.subr.bf16.mxu0 0
    %677 = vmatpush2.bf16.msra.mxu0 0
    %678 = vmatprep.subr.bf16.mxu0 0
    %679 = vmatpush2.bf16.msra.mxu0 0
    %680 = vmatprep.subr.bf16.mxu0 0
    %681 = vmatpush2.bf16.msra.mxu0 0
    %682 = vmatprep.subr.bf16.mxu0 0
    %683 = vmatpush2.bf16.msra.mxu0 0
    %684 = vmatprep.subr.bf16.mxu0 0
    %685 = vmatpush2.bf16.msra.mxu0 0
    %686 = vmatprep.mubr.bf16.mxu0 0
    %687 = vmatmul.mubr.bf16.gmra.mxu0 %v652
    %v688 = vpop.f32.mrf.mxu0
    %v689 = vadd.f32 0.0, %v688
    %v690 = vpop.f32.mrf.mxu0
    %v691 = vpop.f32.mrf.mxu0
    %v692 = vpop.f32.mrf.mxu0
    %693 = vdwg.mxu0
    %v694 = vrot.slane %v647, 1
    %695 = vrot.lane.b32.xlu0 %v694, 32
    %v696 = vpop.permute.xlu0 %695
    %v698 = vsel %vm246, %v696, 0
    %700 = vmatprep.subr.bf16.mxu0 0
    %701 = vmatpush1.bf16.msra.mxu0 0
    %702 = vmatprep.subr.bf16.mxu0 0
    %703 = vmatpush1.bf16.msra.mxu0 0
    %704 = vmatprep.subr.bf16.mxu0 0
    %705 = vmatpush1.bf16.msra.mxu0 0
    %706 = vmatprep.subr.bf16.mxu0 0
    %707 = vmatpush1.bf16.msra.mxu0 0
    %708 = vmatprep.subr.bf16.mxu0 0
    %709 = vmatpush1.bf16.msra.mxu0 0
    %710 = vmatprep.subr.bf16.mxu0 0
    %711 = vmatpush1.bf16.msra.mxu0 0
    %712 = vmatprep.subr.bf16.mxu0 0
    %713 = vmatpush1.bf16.msra.mxu0 %v299
    %714 = vmatprep.subr.bf16.mxu0 0
    %715 = vmatpush1.bf16.msra.mxu0 %v298
    %716 = vmatprep.subr.bf16.mxu0 0
    %717 = vmatpush2.bf16.msra.mxu0 0
    %718 = vmatprep.subr.bf16.mxu0 0
    %719 = vmatpush2.bf16.msra.mxu0 0
    %720 = vmatprep.subr.bf16.mxu0 0
    %721 = vmatpush2.bf16.msra.mxu0 0
    %722 = vmatprep.subr.bf16.mxu0 0
    %723 = vmatpush2.bf16.msra.mxu0 0
    %724 = vmatprep.subr.bf16.mxu0 0
    %725 = vmatpush2.bf16.msra.mxu0 0
    %726 = vmatprep.subr.bf16.mxu0 0
    %727 = vmatpush2.bf16.msra.mxu0 0
    %728 = vmatprep.subr.bf16.mxu0 0
    %729 = vmatpush2.bf16.msra.mxu0 0
    %730 = vmatprep.subr.bf16.mxu0 0
    %731 = vmatpush2.bf16.msra.mxu0 0
    %732 = vmatprep.mubr.bf16.mxu0 0
    %733 = vmatmul.mubr.bf16.gmra.mxu0 %v698
    %v734 = vpop.f32.mrf.mxu0
    %v735 = vadd.f32 0.0, %v734
    %v736 = vpop.f32.mrf.mxu0
    %v737 = vpop.f32.mrf.mxu0
    %v738 = vpop.f32.mrf.mxu0
    %739 = vdwg.mxu0
    %v741 = vrot.slane %v735, 6
    %v743 = vsel %vm232, %v689, %v741
    %v744 = vadd.f32 %v646, %v743
    %v745 = vtanh.pop %v744
    %v746 = vxor.u32 %v744, 2147483648
    %v747 = vmul.f32 %v746, 1.442695
    %v748 = vpow.pop %v747
    %v749 = vadd.f32 %v748, 1.0
    %v750 = vrcp.pop %v749
    %v751 = vmul.f32 1.0, %v750
    %v752 = vsel %vm218, %v745, %v751
    %v753 = vmul.f32 %v752, %v630
    %755 = vrot.lane.b32.xlu0 %v752, 64
    %v756 = vpop.permute.xlu0 %755
    %v758 = vmul.f32 %v752, %v756
    %760 = vrot.lane.b32.xlu0 %v758, 32
    %v761 = vpop.permute.xlu0 %760
    %v763 = vadd.f32 %v753, %v761
    %v764 = vtanh.pop %v763
    %766 = vrot.lane.b32.xlu0 %v764, 64
    %v767 = vpop.permute.xlu0 %766
    %v769 = vmul.f32 %v752, %v767
    %v770 = vadd.f32 %v637, %v769
    %v771 = vrot.slane %v198, 4
    %v772 = vrot.slane %v202, 3
    %v773 = vsel %vm222, %v772, %v771
    %v775 = vrot.slane %v200, 1
    %v776 = vsel %vm229, %v204, %v775
    %v778 = vsel %vm232, %v773, %v776
    %v779 = vpack.c.bf16 %v769, %v769
    %781 = vrot.lane.b32.xlu0 %v779, 32
    %v782 = vpop.permute.xlu0 %781
    %v784 = vsel %vm246, %v782, 0
    %786 = vmatprep.subr.bf16.mxu0 0
    %787 = vmatpush1.bf16.msra.mxu0 0
    %788 = vmatprep.subr.bf16.mxu0 0
    %789 = vmatpush1.bf16.msra.mxu0 0
    %790 = vmatprep.subr.bf16.mxu0 0
    %791 = vmatpush1.bf16.msra.mxu0 0
    %792 = vmatprep.subr.bf16.mxu0 0
    %793 = vmatpush1.bf16.msra.mxu0 0
    %794 = vmatprep.subr.bf16.mxu0 0
    %795 = vmatpush1.bf16.msra.mxu0 0
    %796 = vmatprep.subr.bf16.mxu0 0
    %797 = vmatpush1.bf16.msra.mxu0 0
    %798 = vmatprep.subr.bf16.mxu0 0
    %799 = vmatpush1.bf16.msra.mxu0 %v243
    %800 = vmatprep.subr.bf16.mxu0 0
    %801 = vmatpush1.bf16.msra.mxu0 %v242
    %802 = vmatprep.subr.bf16.mxu0 0
    %803 = vmatpush2.bf16.msra.mxu0 0
    %804 = vmatprep.subr.bf16.mxu0 0
    %805 = vmatpush2.bf16.msra.mxu0 0
    %806 = vmatprep.subr.bf16.mxu0 0
    %807 = vmatpush2.bf16.msra.mxu0 0
    %808 = vmatprep.subr.bf16.mxu0 0
    %809 = vmatpush2.bf16.msra.mxu0 0
    %810 = vmatprep.subr.bf16.mxu0 0
    %811 = vmatpush2.bf16.msra.mxu0 0
    %812 = vmatprep.subr.bf16.mxu0 0
    %813 = vmatpush2.bf16.msra.mxu0 0
    %814 = vmatprep.subr.bf16.mxu0 0
    %815 = vmatpush2.bf16.msra.mxu0 0
    %816 = vmatprep.subr.bf16.mxu0 0
    %817 = vmatpush2.bf16.msra.mxu0 0
    %818 = vmatprep.mubr.bf16.mxu0 0
    %819 = vmatmul.mubr.bf16.gmra.mxu0 %v784
    %v820 = vpop.f32.mrf.mxu0
    %v821 = vadd.f32 0.0, %v820
    %v822 = vpop.f32.mrf.mxu0
    %v823 = vpop.f32.mrf.mxu0
    %v824 = vpop.f32.mrf.mxu0
    %825 = vdwg.mxu0
    %v826 = vrot.slane %v779, 1
    %827 = vrot.lane.b32.xlu0 %v826, 32
    %v828 = vpop.permute.xlu0 %827
    %v830 = vsel %vm246, %v828, 0
    %832 = vmatprep.subr.bf16.mxu0 0
    %833 = vmatpush1.bf16.msra.mxu0 0
    %834 = vmatprep.subr.bf16.mxu0 0
    %835 = vmatpush1.bf16.msra.mxu0 0
    %836 = vmatprep.subr.bf16.mxu0 0
    %837 = vmatpush1.bf16.msra.mxu0 0
    %838 = vmatprep.subr.bf16.mxu0 0
    %839 = vmatpush1.bf16.msra.mxu0 0
    %840 = vmatprep.subr.bf16.mxu0 0
    %841 = vmatpush1.bf16.msra.mxu0 0
    %842 = vmatprep.subr.bf16.mxu0 0
    %843 = vmatpush1.bf16.msra.mxu0 0
    %844 = vmatprep.subr.bf16.mxu0 0
    %845 = vmatpush1.bf16.msra.mxu0 %v299
    %846 = vmatprep.subr.bf16.mxu0 0
    %847 = vmatpush1.bf16.msra.mxu0 %v298
    %848 = vmatprep.subr.bf16.mxu0 0
    %849 = vmatpush2.bf16.msra.mxu0 0
    %850 = vmatprep.subr.bf16.mxu0 0
    %851 = vmatpush2.bf16.msra.mxu0 0
    %852 = vmatprep.subr.bf16.mxu0 0
    %853 = vmatpush2.bf16.msra.mxu0 0
    %854 = vmatprep.subr.bf16.mxu0 0
    %855 = vmatpush2.bf16.msra.mxu0 0
    %856 = vmatprep.subr.bf16.mxu0 0
    %857 = vmatpush2.bf16.msra.mxu0 0
    %858 = vmatprep.subr.bf16.mxu0 0
    %859 = vmatpush2.bf16.msra.mxu0 0
    %860 = vmatprep.subr.bf16.mxu0 0
    %861 = vmatpush2.bf16.msra.mxu0 0
    %862 = vmatprep.subr.bf16.mxu0 0
    %863 = vmatpush2.bf16.msra.mxu0 0
    %864 = vmatprep.mubr.bf16.mxu0 0
    %865 = vmatmul.mubr.bf16.gmra.mxu0 %v830
    %v866 = vpop.f32.mrf.mxu0
    %v867 = vadd.f32 0.0, %v866
    %v868 = vpop.f32.mrf.mxu0
    %v869 = vpop.f32.mrf.mxu0
    %v870 = vpop.f32.mrf.mxu0
    %871 = vdwg.mxu0
    %v873 = vrot.slane %v867, 6
    %v875 = vsel %vm232, %v821, %v873
    %v876 = vadd.f32 %v778, %v875
    %v877 = vtanh.pop %v876
    %v878 = vxor.u32 %v876, 2147483648
    %v879 = vmul.f32 %v878, 1.442695
    %v880 = vpow.pop %v879
    %v881 = vadd.f32 %v880, 1.0
    %v882 = vrcp.pop %v881
    %v883 = vmul.f32 1.0, %v882
    %v884 = vsel %vm218, %v877, %v883
    %v885 = vmul.f32 %v884, %v763
    %887 = vrot.lane.b32.xlu0 %v884, 64
    %v888 = vpop.permute.xlu0 %887
    %v890 = vmul.f32 %v884, %v888
    %892 = vrot.lane.b32.xlu0 %v890, 32
    %v893 = vpop.permute.xlu0 %892
    %v895 = vadd.f32 %v885, %v893
    %v896 = vtanh.pop %v895
    %898 = vrot.lane.b32.xlu0 %v896, 64
    %v899 = vpop.permute.xlu0 %898
    %v901 = vmul.f32 %v884, %v899
    %v902 = vadd.f32 %v770, %v901
    %v903 = vrot.slane %v198, 5
    %v904 = vrot.slane %v202, 4
    %v905 = vsel %vm222, %v904, %v903
    %v907 = vrot.slane %v204, 7
    %v908 = vsel %vm229, %v907, %v200
    %v910 = vsel %vm232, %v905, %v908
    %v911 = vpack.c.bf16 %v901, %v901
    %913 = vrot.lane.b32.xlu0 %v911, 32
    %v914 = vpop.permute.xlu0 %913
    %v916 = vsel %vm246, %v914, 0
    %918 = vmatprep.subr.bf16.mxu0 0
    %919 = vmatpush1.bf16.msra.mxu0 0
    %920 = vmatprep.subr.bf16.mxu0 0
    %921 = vmatpush1.bf16.msra.mxu0 0
    %922 = vmatprep.subr.bf16.mxu0 0
    %923 = vmatpush1.bf16.msra.mxu0 0
    %924 = vmatprep.subr.bf16.mxu0 0
    %925 = vmatpush1.bf16.msra.mxu0 0
    %926 = vmatprep.subr.bf16.mxu0 0
    %927 = vmatpush1.bf16.msra.mxu0 0
    %928 = vmatprep.subr.bf16.mxu0 0
    %929 = vmatpush1.bf16.msra.mxu0 0
    %930 = vmatprep.subr.bf16.mxu0 0
    %931 = vmatpush1.bf16.msra.mxu0 %v243
    %932 = vmatprep.subr.bf16.mxu0 0
    %933 = vmatpush1.bf16.msra.mxu0 %v242
    %934 = vmatprep.subr.bf16.mxu0 0
    %935 = vmatpush2.bf16.msra.mxu0 0
    %936 = vmatprep.subr.bf16.mxu0 0
    %937 = vmatpush2.bf16.msra.mxu0 0
    %938 = vmatprep.subr.bf16.mxu0 0
    %939 = vmatpush2.bf16.msra.mxu0 0
    %940 = vmatprep.subr.bf16.mxu0 0
    %941 = vmatpush2.bf16.msra.mxu0 0
    %942 = vmatprep.subr.bf16.mxu0 0
    %943 = vmatpush2.bf16.msra.mxu0 0
    %944 = vmatprep.subr.bf16.mxu0 0
    %945 = vmatpush2.bf16.msra.mxu0 0
    %946 = vmatprep.subr.bf16.mxu0 0
    %947 = vmatpush2.bf16.msra.mxu0 0
    %948 = vmatprep.subr.bf16.mxu0 0
    %949 = vmatpush2.bf16.msra.mxu0 0
    %950 = vmatprep.mubr.bf16.mxu0 0
    %951 = vmatmul.mubr.bf16.gmra.mxu0 %v916
    %v952 = vpop.f32.mrf.mxu0
    %v953 = vadd.f32 0.0, %v952
    %v954 = vpop.f32.mrf.mxu0
    %v955 = vpop.f32.mrf.mxu0
    %v956 = vpop.f32.mrf.mxu0
    %957 = vdwg.mxu0
    %v958 = vrot.slane %v911, 1
    %959 = vrot.lane.b32.xlu0 %v958, 32
    %v960 = vpop.permute.xlu0 %959
    %v962 = vsel %vm246, %v960, 0
    %964 = vmatprep.subr.bf16.mxu0 0
    %965 = vmatpush1.bf16.msra.mxu0 0
    %966 = vmatprep.subr.bf16.mxu0 0
    %967 = vmatpush1.bf16.msra.mxu0 0
    %968 = vmatprep.subr.bf16.mxu0 0
    %969 = vmatpush1.bf16.msra.mxu0 0
    %970 = vmatprep.subr.bf16.mxu0 0
    %971 = vmatpush1.bf16.msra.mxu0 0
    %972 = vmatprep.subr.bf16.mxu0 0
    %973 = vmatpush1.bf16.msra.mxu0 0
    %974 = vmatprep.subr.bf16.mxu0 0
    %975 = vmatpush1.bf16.msra.mxu0 0
    %976 = vmatprep.subr.bf16.mxu0 0
    %977 = vmatpush1.bf16.msra.mxu0 %v299
    %978 = vmatprep.subr.bf16.mxu0 0
    %979 = vmatpush1.bf16.msra.mxu0 %v298
    %980 = vmatprep.subr.bf16.mxu0 0
    %981 = vmatpush2.bf16.msra.mxu0 0
    %982 = vmatprep.subr.bf16.mxu0 0
    %983 = vmatpush2.bf16.msra.mxu0 0
    %984 = vmatprep.subr.bf16.mxu0 0
    %985 = vmatpush2.bf16.msra.mxu0 0
    %986 = vmatprep.subr.bf16.mxu0 0
    %987 = vmatpush2.bf16.msra.mxu0 0
    %988 = vmatprep.subr.bf16.mxu0 0
    %989 = vmatpush2.bf16.msra.mxu0 0
    %990 = vmatprep.subr.bf16.mxu0 0
    %991 = vmatpush2.bf16.msra.mxu0 0
    %992 = vmatprep.subr.bf16.mxu0 0
    %993 = vmatpush2.bf16.msra.mxu0 0
    %994 = vmatprep.subr.bf16.mxu0 0
    %995 = vmatpush2.bf16.msra.mxu0 0
    %996 = vmatprep.mubr.bf16.mxu0 0
    %997 = vmatmul.mubr.bf16.gmra.mxu0 %v962
    %v998 = vpop.f32.mrf.mxu0
    %v999 = vadd.f32 0.0, %v998
    %v1000 = vpop.f32.mrf.mxu0
    %v1001 = vpop.f32.mrf.mxu0
    %v1002 = vpop.f32.mrf.mxu0
    %1003 = vdwg.mxu0
    %v1005 = vrot.slane %v999, 6
    %v1007 = vsel %vm232, %v953, %v1005
    %v1008 = vadd.f32 %v910, %v1007
    %v1009 = vtanh.pop %v1008
    %v1010 = vxor.u32 %v1008, 2147483648
    %v1011 = vmul.f32 %v1010, 1.442695
    %v1012 = vpow.pop %v1011
    %v1013 = vadd.f32 %v1012, 1.0
    %v1014 = vrcp.pop %v1013
    %v1015 = vmul.f32 1.0, %v1014
    %v1016 = vsel %vm218, %v1009, %v1015
    %v1017 = vmul.f32 %v1016, %v895
    %1019 = vrot.lane.b32.xlu0 %v1016, 64
    %v1020 = vpop.permute.xlu0 %1019
    %v1022 = vmul.f32 %v1016, %v1020
    %1024 = vrot.lane.b32.xlu0 %v1022, 32
    %v1025 = vpop.permute.xlu0 %1024
    %v1027 = vadd.f32 %v1017, %v1025
    %v1028 = vtanh.pop %v1027
    %1030 = vrot.lane.b32.xlu0 %v1028, 64
    %v1031 = vpop.permute.xlu0 %1030
    %v1033 = vmul.f32 %v1016, %v1031
    %v1034 = vadd.f32 %v902, %v1033
    %v1035 = vrot.slane %v198, 6
    %v1036 = vrot.slane %v202, 5
    %v1037 = vsel %vm222, %v1036, %v1035
    %v1039 = vrot.slane %v200, 7
    %v1040 = vrot.slane %v204, 6
    %v1041 = vsel %vm229, %v1040, %v1039
    %v1043 = vsel %vm232, %v1037, %v1041
    %v1044 = vpack.c.bf16 %v1033, %v1033
    %1046 = vrot.lane.b32.xlu0 %v1044, 32
    %v1047 = vpop.permute.xlu0 %1046
    %v1049 = vsel %vm246, %v1047, 0
    %1051 = vmatprep.subr.bf16.mxu0 0
    %1052 = vmatpush1.bf16.msra.mxu0 0
    %1053 = vmatprep.subr.bf16.mxu0 0
    %1054 = vmatpush1.bf16.msra.mxu0 0
    %1055 = vmatprep.subr.bf16.mxu0 0
    %1056 = vmatpush1.bf16.msra.mxu0 0
    %1057 = vmatprep.subr.bf16.mxu0 0
    %1058 = vmatpush1.bf16.msra.mxu0 0
    %1059 = vmatprep.subr.bf16.mxu0 0
    %1060 = vmatpush1.bf16.msra.mxu0 0
    %1061 = vmatprep.subr.bf16.mxu0 0
    %1062 = vmatpush1.bf16.msra.mxu0 0
    %1063 = vmatprep.subr.bf16.mxu0 0
    %1064 = vmatpush1.bf16.msra.mxu0 %v243
    %1065 = vmatprep.subr.bf16.mxu0 0
    %1066 = vmatpush1.bf16.msra.mxu0 %v242
    %1067 = vmatprep.subr.bf16.mxu0 0
    %1068 = vmatpush2.bf16.msra.mxu0 0
    %1069 = vmatprep.subr.bf16.mxu0 0
    %1070 = vmatpush2.bf16.msra.mxu0 0
    %1071 = vmatprep.subr.bf16.mxu0 0
    %1072 = vmatpush2.bf16.msra.mxu0 0
    %1073 = vmatprep.subr.bf16.mxu0 0
    %1074 = vmatpush2.bf16.msra.mxu0 0
    %1075 = vmatprep.subr.bf16.mxu0 0
    %1076 = vmatpush2.bf16.msra.mxu0 0
    %1077 = vmatprep.subr.bf16.mxu0 0
    %1078 = vmatpush2.bf16.msra.mxu0 0
    %1079 = vmatprep.subr.bf16.mxu0 0
    %1080 = vmatpush2.bf16.msra.mxu0 0
    %1081 = vmatprep.subr.bf16.mxu0 0
    %1082 = vmatpush2.bf16.msra.mxu0 0
    %1083 = vmatprep.mubr.bf16.mxu0 0
    %1084 = vmatmul.mubr.bf16.gmra.mxu0 %v1049
    %v1085 = vpop.f32.mrf.mxu0
    %v1086 = vadd.f32 0.0, %v1085
    %v1087 = vpop.f32.mrf.mxu0
    %v1088 = vpop.f32.mrf.mxu0
    %v1089 = vpop.f32.mrf.mxu0
    %1090 = vdwg.mxu0
    %v1091 = vrot.slane %v1044, 1
    %1092 = vrot.lane.b32.xlu0 %v1091, 32
    %v1093 = vpop.permute.xlu0 %1092
    %v1095 = vsel %vm246, %v1093, 0
    %1097 = vmatprep.subr.bf16.mxu0 0
    %1098 = vmatpush1.bf16.msra.mxu0 0
    %1099 = vmatprep.subr.bf16.mxu0 0
    %1100 = vmatpush1.bf16.msra.mxu0 0
    %1101 = vmatprep.subr.bf16.mxu0 0
    %1102 = vmatpush1.bf16.msra.mxu0 0
    %1103 = vmatprep.subr.bf16.mxu0 0
    %1104 = vmatpush1.bf16.msra.mxu0 0
    %1105 = vmatprep.subr.bf16.mxu0 0
    %1106 = vmatpush1.bf16.msra.mxu0 0
    %1107 = vmatprep.subr.bf16.mxu0 0
    %1108 = vmatpush1.bf16.msra.mxu0 0
    %1109 = vmatprep.subr.bf16.mxu0 0
    %1110 = vmatpush1.bf16.msra.mxu0 %v299
    %1111 = vmatprep.subr.bf16.mxu0 0
    %1112 = vmatpush1.bf16.msra.mxu0 %v298
    %1113 = vmatprep.subr.bf16.mxu0 0
    %1114 = vmatpush2.bf16.msra.mxu0 0
    %1115 = vmatprep.subr.bf16.mxu0 0
    %1116 = vmatpush2.bf16.msra.mxu0 0
    %1117 = vmatprep.subr.bf16.mxu0 0
    %1118 = vmatpush2.bf16.msra.mxu0 0
    %1119 = vmatprep.subr.bf16.mxu0 0
    %1120 = vmatpush2.bf16.msra.mxu0 0
    %1121 = vmatprep.subr.bf16.mxu0 0
    %1122 = vmatpush2.bf16.msra.mxu0 0
    %1123 = vmatprep.subr.bf16.mxu0 0
    %1124 = vmatpush2.bf16.msra.mxu0 0
    %1125 = vmatprep.subr.bf16.mxu0 0
    %1126 = vmatpush2.bf16.msra.mxu0 0
    %1127 = vmatprep.subr.bf16.mxu0 0
    %1128 = vmatpush2.bf16.msra.mxu0 0
    %1129 = vmatprep.mubr.bf16.mxu0 0
    %1130 = vmatmul.mubr.bf16.gmra.mxu0 %v1095
    %v1131 = vpop.f32.mrf.mxu0
    %v1132 = vadd.f32 0.0, %v1131
    %v1133 = vpop.f32.mrf.mxu0
    %v1134 = vpop.f32.mrf.mxu0
    %v1135 = vpop.f32.mrf.mxu0
    %1136 = vdwg.mxu0
    %v1138 = vrot.slane %v1132, 6
    %v1140 = vsel %vm232, %v1086, %v1138
    %v1141 = vadd.f32 %v1043, %v1140
    %v1142 = vtanh.pop %v1141
    %v1143 = vxor.u32 %v1141, 2147483648
    %v1144 = vmul.f32 %v1143, 1.442695
    %v1145 = vpow.pop %v1144
    %v1146 = vadd.f32 %v1145, 1.0
    %v1147 = vrcp.pop %v1146
    %v1148 = vmul.f32 1.0, %v1147
    %v1149 = vsel %vm218, %v1142, %v1148
    %v1150 = vmul.f32 %v1149, %v1027
    %1152 = vrot.lane.b32.xlu0 %v1149, 64
    %v1153 = vpop.permute.xlu0 %1152
    %v1155 = vmul.f32 %v1149, %v1153
    %1157 = vrot.lane.b32.xlu0 %v1155, 32
    %v1158 = vpop.permute.xlu0 %1157
    %v1160 = vadd.f32 %v1150, %v1158
    %v1161 = vtanh.pop %v1160
    %1163 = vrot.lane.b32.xlu0 %v1161, 64
    %v1164 = vpop.permute.xlu0 %1163
    %v1166 = vmul.f32 %v1149, %v1164
    %v1167 = vadd.f32 %v1034, %v1166
    %v1168 = vrot.slane %v198, 7
    %v1169 = vrot.slane %v202, 6
    %v1170 = vsel %vm222, %v1169, %v1168
    %v1172 = vrot.slane %v200, 6
    %v1173 = vrot.slane %v204, 5
    %v1174 = vsel %vm229, %v1173, %v1172
    %v1176 = vsel %vm232, %v1170, %v1174
    %v1177 = vpack.c.bf16 %v1166, %v1166
    %1179 = vrot.lane.b32.xlu0 %v1177, 32
    %v1180 = vpop.permute.xlu0 %1179
    %v1182 = vsel %vm246, %v1180, 0
    %1184 = vmatprep.subr.bf16.mxu0 0
    %1185 = vmatpush1.bf16.msra.mxu0 0
    %1186 = vmatprep.subr.bf16.mxu0 0
    %1187 = vmatpush1.bf16.msra.mxu0 0
    %1188 = vmatprep.subr.bf16.mxu0 0
    %1189 = vmatpush1.bf16.msra.mxu0 0
    %1190 = vmatprep.subr.bf16.mxu0 0
    %1191 = vmatpush1.bf16.msra.mxu0 0
    %1192 = vmatprep.subr.bf16.mxu0 0
    %1193 = vmatpush1.bf16.msra.mxu0 0
    %1194 = vmatprep.subr.bf16.mxu0 0
    %1195 = vmatpush1.bf16.msra.mxu0 0
    %1196 = vmatprep.subr.bf16.mxu0 0
    %1197 = vmatpush1.bf16.msra.mxu0 %v243
    %1198 = vmatprep.subr.bf16.mxu0 0
    %1199 = vmatpush1.bf16.msra.mxu0 %v242
    %1200 = vmatprep.subr.bf16.mxu0 0
    %1201 = vmatpush2.bf16.msra.mxu0 0
    %1202 = vmatprep.subr.bf16.mxu0 0
    %1203 = vmatpush2.bf16.msra.mxu0 0
    %1204 = vmatprep.subr.bf16.mxu0 0
    %1205 = vmatpush2.bf16.msra.mxu0 0
    %1206 = vmatprep.subr.bf16.mxu0 0
    %1207 = vmatpush2.bf16.msra.mxu0 0
    %1208 = vmatprep.subr.bf16.mxu0 0
    %1209 = vmatpush2.bf16.msra.mxu0 0
    %1210 = vmatprep.subr.bf16.mxu0 0
    %1211 = vmatpush2.bf16.msra.mxu0 0
    %1212 = vmatprep.subr.bf16.mxu0 0
    %1213 = vmatpush2.bf16.msra.mxu0 0
    %1214 = vmatprep.subr.bf16.mxu0 0
    %1215 = vmatpush2.bf16.msra.mxu0 0
    %1216 = vmatprep.mubr.bf16.mxu0 0
    %1217 = vmatmul.mubr.bf16.gmra.mxu0 %v1182
    %v1218 = vpop.f32.mrf.mxu0
    %v1219 = vadd.f32 0.0, %v1218
    %v1220 = vpop.f32.mrf.mxu0
    %v1221 = vpop.f32.mrf.mxu0
    %v1222 = vpop.f32.mrf.mxu0
    %1223 = vdwg.mxu0
    %v1224 = vrot.slane %v1177, 1
    %1225 = vrot.lane.b32.xlu0 %v1224, 32
    %v1226 = vpop.permute.xlu0 %1225
    %v1228 = vsel %vm246, %v1226, 0
    %1230 = vmatprep.subr.bf16.mxu0 0
    %1231 = vmatpush1.bf16.msra.mxu0 0
    %1232 = vmatprep.subr.bf16.mxu0 0
    %1233 = vmatpush1.bf16.msra.mxu0 0
    %1234 = vmatprep.subr.bf16.mxu0 0
    %1235 = vmatpush1.bf16.msra.mxu0 0
    %1236 = vmatprep.subr.bf16.mxu0 0
    %1237 = vmatpush1.bf16.msra.mxu0 0
    %1238 = vmatprep.subr.bf16.mxu0 0
    %1239 = vmatpush1.bf16.msra.mxu0 0
    %1240 = vmatprep.subr.bf16.mxu0 0
    %1241 = vmatpush1.bf16.msra.mxu0 0
    %1242 = vmatprep.subr.bf16.mxu0 0
    %1243 = vmatpush1.bf16.msra.mxu0 %v299
    %1244 = vmatprep.subr.bf16.mxu0 0
    %1245 = vmatpush1.bf16.msra.mxu0 %v298
    %1246 = vmatprep.subr.bf16.mxu0 0
    %1247 = vmatpush2.bf16.msra.mxu0 0
    %1248 = vmatprep.subr.bf16.mxu0 0
    %1249 = vmatpush2.bf16.msra.mxu0 0
    %1250 = vmatprep.subr.bf16.mxu0 0
    %1251 = vmatpush2.bf16.msra.mxu0 0
    %1252 = vmatprep.subr.bf16.mxu0 0
    %1253 = vmatpush2.bf16.msra.mxu0 0
    %1254 = vmatprep.subr.bf16.mxu0 0
    %1255 = vmatpush2.bf16.msra.mxu0 0
    %1256 = vmatprep.subr.bf16.mxu0 0
    %1257 = vmatpush2.bf16.msra.mxu0 0
    %1258 = vmatprep.subr.bf16.mxu0 0
    %1259 = vmatpush2.bf16.msra.mxu0 0
    %1260 = vmatprep.subr.bf16.mxu0 0
    %1261 = vmatpush2.bf16.msra.mxu0 0
    %1262 = vmatprep.mubr.bf16.mxu0 0
    %1263 = vmatmul.mubr.bf16.gmra.mxu0 %v1228
    %v1264 = vpop.f32.mrf.mxu0
    %v1265 = vadd.f32 0.0, %v1264
    %v1266 = vpop.f32.mrf.mxu0
    %v1267 = vpop.f32.mrf.mxu0
    %v1268 = vpop.f32.mrf.mxu0
    %1269 = vdwg.mxu0
    %v1271 = vrot.slane %v1265, 6
    %v1273 = vsel %vm232, %v1219, %v1271
    %v1274 = vadd.f32 %v1176, %v1273
    %v1275 = vtanh.pop %v1274
    %v1276 = vxor.u32 %v1274, 2147483648
    %v1277 = vmul.f32 %v1276, 1.442695
    %v1278 = vpow.pop %v1277
    %v1279 = vadd.f32 %v1278, 1.0
    %v1280 = vrcp.pop %v1279
    %v1281 = vmul.f32 1.0, %v1280
    %v1282 = vsel %vm218, %v1275, %v1281
    %v1283 = vmul.f32 %v1282, %v1160
    %1285 = vrot.lane.b32.xlu0 %v1282, 64
    %v1286 = vpop.permute.xlu0 %1285
    %v1288 = vmul.f32 %v1282, %v1286
    %1290 = vrot.lane.b32.xlu0 %v1288, 32
    %v1291 = vpop.permute.xlu0 %1290
    %v1293 = vadd.f32 %v1283, %v1291
    %v1294 = vtanh.pop %v1293
    %1296 = vrot.lane.b32.xlu0 %v1294, 64
    %v1297 = vpop.permute.xlu0 %1296
    %v1299 = vmul.f32 %v1282, %v1297
    %v1300 = vadd.f32 %v1167, %v1299
    %v1301 = vpack.c.bf16 %v1300, %v1300
    %v1302 = vld [vmem:[#allocation10] sm:$0xf]
    %v1303 = vld [vmem:[#allocation10 + $0x4] sm:$0xf]
    %v1304 = vld [vmem:[#allocation10 + $0x8] sm:$0xf]
    %v1305 = vld [vmem:[#allocation10 + $0xc] sm:$0xf]
    %v1306 = vld [vmem:[#allocation11] sm:$0xf]
    %v1307 = vld [vmem:[#allocation11 + $0x4] sm:$0xf]
    %v1308 = vld [vmem:[#allocation11 + $0x8] sm:$0xf]
    %v1309 = vld [vmem:[#allocation11 + $0xc] sm:$0xf]
    %v1311 = vrot.slane %v1301, 1
    %1312 = vrot.lane.b32.xlu0 %v1311, 32
    %v1313 = vpop.permute.xlu0 %1312
    %v1318 = vunpack.c.l.b16 %v1306
    %v1319 = vunpack.c.l.b16 %v1307
    %v1320 = vunpack.c.l.b16 %v1308
    %v1321 = vunpack.c.l.b16 %v1309
    %v1322 = vpack.c.b16 %v1319, %v1318
    %v1323 = vpack.c.b16 %v1321, %v1320
    %v1327 = vsel %vm246, %v1313, 0
    %1329 = vmatprep.subr.bf16.mxu0 0
    %1330 = vmatpush1.bf16.msra.mxu0 0
    %1331 = vmatprep.subr.bf16.mxu0 0
    %1332 = vmatpush1.bf16.msra.mxu0 0
    %1333 = vmatprep.subr.bf16.mxu0 0
    %1334 = vmatpush1.bf16.msra.mxu0 0
    %1335 = vmatprep.subr.bf16.mxu0 0
    %1336 = vmatpush1.bf16.msra.mxu0 0
    %1337 = vmatprep.subr.bf16.mxu0 0
    %1338 = vmatpush1.bf16.msra.mxu0 0
    %1339 = vmatprep.subr.bf16.mxu0 0
    %1340 = vmatpush1.bf16.msra.mxu0 0
    %1341 = vmatprep.subr.bf16.mxu0 0
    %1342 = vmatpush1.bf16.msra.mxu0 %v1323
    %1343 = vmatprep.subr.bf16.mxu0 0
    %1344 = vmatpush1.bf16.msra.mxu0 %v1322
    %1345 = vmatprep.subr.bf16.mxu0 0
    %1346 = vmatpush2.bf16.msra.mxu0 0
    %1347 = vmatprep.subr.bf16.mxu0 0
    %1348 = vmatpush2.bf16.msra.mxu0 0
    %1349 = vmatprep.subr.bf16.mxu0 0
    %1350 = vmatpush2.bf16.msra.mxu0 0
    %1351 = vmatprep.subr.bf16.mxu0 0
    %1352 = vmatpush2.bf16.msra.mxu0 0
    %1353 = vmatprep.subr.bf16.mxu0 0
    %1354 = vmatpush2.bf16.msra.mxu0 0
    %1355 = vmatprep.subr.bf16.mxu0 0
    %1356 = vmatpush2.bf16.msra.mxu0 0
    %1357 = vmatprep.subr.bf16.mxu0 0
    %1358 = vmatpush2.bf16.msra.mxu0 0
    %1359 = vmatprep.subr.bf16.mxu0 0
    %1360 = vmatpush2.bf16.msra.mxu0 0
    %1361 = vmatprep.mubr.bf16.mxu0 0
    %1362 = vmatmul.mubr.bf16.gmra.mxu0 %v1327
    %v1363 = vpop.f32.mrf.mxu0
    %v1364 = vadd.f32 0.0, %v1363
    %v1365 = vpop.f32.mrf.mxu0
    %v1366 = vpop.f32.mrf.mxu0
    %v1367 = vpop.f32.mrf.mxu0
    %1368 = vdwg.mxu0
    %1369 = vrot.lane.b32.xlu0 %v1301, 32
    %v1370 = vpop.permute.xlu0 %1369
    %v1375 = vunpack.c.l.b16 %v1302
    %v1376 = vunpack.c.l.b16 %v1303
    %v1377 = vunpack.c.l.b16 %v1304
    %v1378 = vunpack.c.l.b16 %v1305
    %v1379 = vpack.c.b16 %v1376, %v1375
    %v1380 = vpack.c.b16 %v1378, %v1377
    %v1384 = vsel %vm246, %v1370, 0
    %1386 = vmatprep.subr.bf16.mxu0 0
    %1387 = vmatpush1.bf16.msra.mxu0 0
    %1388 = vmatprep.subr.bf16.mxu0 0
    %1389 = vmatpush1.bf16.msra.mxu0 0
    %1390 = vmatprep.subr.bf16.mxu0 0
    %1391 = vmatpush1.bf16.msra.mxu0 0
    %1392 = vmatprep.subr.bf16.mxu0 0
    %1393 = vmatpush1.bf16.msra.mxu0 0
    %1394 = vmatprep.subr.bf16.mxu0 0
    %1395 = vmatpush1.bf16.msra.mxu0 0
    %1396 = vmatprep.subr.bf16.mxu0 0
    %1397 = vmatpush1.bf16.msra.mxu0 0
    %1398 = vmatprep.subr.bf16.mxu0 0
    %1399 = vmatpush1.bf16.msra.mxu0 %v1380
    %1400 = vmatprep.subr.bf16.mxu0 0
    %1401 = vmatpush1.bf16.msra.mxu0 %v1379
    %1402 = vmatprep.subr.bf16.mxu0 0
    %1403 = vmatpush2.bf16.msra.mxu0 0
    %1404 = vmatprep.subr.bf16.mxu0 0
    %1405 = vmatpush2.bf16.msra.mxu0 0
    %1406 = vmatprep.subr.bf16.mxu0 0
    %1407 = vmatpush2.bf16.msra.mxu0 0
    %1408 = vmatprep.subr.bf16.mxu0 0
    %1409 = vmatpush2.bf16.msra.mxu0 0
    %1410 = vmatprep.subr.bf16.mxu0 0
    %1411 = vmatpush2.bf16.msra.mxu0 0
    %1412 = vmatprep.subr.bf16.mxu0 0
    %1413 = vmatpush2.bf16.msra.mxu0 0
    %1414 = vmatprep.subr.bf16.mxu0 0
    %1415 = vmatpush2.bf16.msra.mxu0 0
    %1416 = vmatprep.subr.bf16.mxu0 0
    %1417 = vmatpush2.bf16.msra.mxu0 0
    %1418 = vmatprep.mubr.bf16.mxu0 0
    %1419 = vmatmul.mubr.bf16.gmra.mxu0 %v1384
    %v1420 = vpop.f32.mrf.mxu0
    %v1421 = vadd.f32 %v1364, %v1420
    %v1422 = vpop.f32.mrf.mxu0
    %v1423 = vpop.f32.mrf.mxu0
    %v1424 = vpop.f32.mrf.mxu0
    %1425 = vdwg.mxu0
    %v1426 = vld [vmem:[%s7] sm:$0x1]
    %v1428 = vlaneseq
    %v1429 = vshrl.u32 %v1428, 7
    %v1430 = vsub.s32 0, %v1429
    %v1431 = vrot.slane %v1426, %v1430
    %v1433 = vadd.f32 %v1421, %v1431
    %v1434 = vtanh.pop %v1433
    %v1435 = vpack.c.bf16 %v1434, %v1434
    %v1436 = vld [vmem:[#allocation13] sm:$0xf]
    %v1437 = vld [vmem:[#allocation13 + $0x4] sm:$0xf]
    %v1438 = vld [vmem:[#allocation13 + $0x8] sm:$0xf]
    %v1439 = vld [vmem:[#allocation13 + $0xc] sm:$0xf]
    %v1440 = vld [vmem:[%s9] sm:$0x1]
    %v1442 = vlaneseq
    %v1443 = vshrl.u32 %v1442, 7
    %v1444 = vsub.s32 0, %v1443
    %v1445 = vrot.slane %v1440, %v1444
    %v1451 = vunpack.c.l.b16 %v1436
    %v1452 = vunpack.c.l.b16 %v1437
    %v1453 = vunpack.c.l.b16 %v1438
    %v1454 = vunpack.c.l.b16 %v1439
    %v1455 = vpack.c.b16 %v1452, %v1451
    %v1456 = vpack.c.b16 %v1454, %v1453
    %v1460 = vsel %vm246, %v1435, 0
    %1462 = vmatprep.subr.bf16.mxu0 0
    %1463 = vmatpush1.bf16.msra.mxu0 0
    %1464 = vmatprep.subr.bf16.mxu0 0
    %1465 = vmatpush1.bf16.msra.mxu0 0
    %1466 = vmatprep.subr.bf16.mxu0 0
    %1467 = vmatpush1.bf16.msra.mxu0 0
    %1468 = vmatprep.subr.bf16.mxu0 0
    %1469 = vmatpush1.bf16.msra.mxu0 0
    %1470 = vmatprep.subr.bf16.mxu0 0
    %1471 = vmatpush1.bf16.msra.mxu0 0
    %1472 = vmatprep.subr.bf16.mxu0 0
    %1473 = vmatpush1.bf16.msra.mxu0 0
    %1474 = vmatprep.subr.bf16.mxu0 0
    %1475 = vmatpush1.bf16.msra.mxu0 %v1456
    %1476 = vmatprep.subr.bf16.mxu0 0
    %1477 = vmatpush1.bf16.msra.mxu0 %v1455
    %1478 = vmatprep.subr.bf16.mxu0 0
    %1479 = vmatpush2.bf16.msra.mxu0 0
    %1480 = vmatprep.subr.bf16.mxu0 0
    %1481 = vmatpush2.bf16.msra.mxu0 0
    %1482 = vmatprep.subr.bf16.mxu0 0
    %1483 = vmatpush2.bf16.msra.mxu0 0
    %1484 = vmatprep.subr.bf16.mxu0 0
    %1485 = vmatpush2.bf16.msra.mxu0 0
    %1486 = vmatprep.subr.bf16.mxu0 0
    %1487 = vmatpush2.bf16.msra.mxu0 0
    %1488 = vmatprep.subr.bf16.mxu0 0
    %1489 = vmatpush2.bf16.msra.mxu0 0
    %1490 = vmatprep.subr.bf16.mxu0 0
    %1491 = vmatpush2.bf16.msra.mxu0 0
    %1492 = vmatprep.subr.bf16.mxu0 0
    %1493 = vmatpush2.bf16.msra.mxu0 0
    %1494 = vmatprep.mubr.bf16.mxu0 0
    %1495 = vmatmul.mubr.bf16.gmra.mxu0 %v1460
    %v1496 = vpop.f32.mrf.mxu0
    %v1497 = vadd.f32 %v1445, %v1496
    %v1498 = vpop.f32.mrf.mxu0
    %v1499 = vpop.f32.mrf.mxu0
    %v1500 = vpop.f32.mrf.mxu0
    %1501 = vdwg.mxu0
    %v1502 = vtanh.pop %v1497
    %v1503 = vmul.f32 %v1502, %v1502
    %vm1504 = vcmask 254976
    %v1505 = vsel %vm1504, %v1503, 0.0
    %1506 = vadd.xlane.f32.xlu0 %v1505
    %v1507 = vpop.xlane.xlu0 %1506
    %v1508 = vadd.f32 %v1507, 1e-12
    %v1509 = vrsqrt.pop %v1508
    %v1510 = vmul.f32 %v1502, %v1509
    %1511 = vst.msk [vmem:[#allocation14] sm:$0x3] %vm1504, %v1510
    // Predicated region
    $region70: #{tpu_custom_call.1} parent=1 // pred_check
      _
    $region71: #{tpu_custom_call.1} parent=1 // pred_check_branch
      %1513 = sbr.rel (0) target = $region73
    $region72: #{tpu_custom_call.1} parent=1 // pred_region
      %s1515 = ssub.s32 32, 32
      %1516 = vsyncadd [#allocation4], %s1515
      %s1518 = sshll.u32 [#allocation14], 4
      %s1519 = int_to_ptr.vmem [resolvable:$true] %s1518
      %1521 = dma.vmem_to_hbm [thread:$0]  %s1519, 32, %s10, [#allocation4]
    $region73: #{tpu_custom_call.1} parent=1 // pred_fallthru
      _
    // Predicated region
    $region74: #{tpu_custom_call.1} parent=1 // pred_check
      _
    $region75: #{tpu_custom_call.1} parent=1 // pred_check_branch
      %1523 = sbr.rel (0) target = $region77
    $region76: #{tpu_custom_call.1} parent=1 // pred_region
      %1524 = dma.done [#allocation4], 32
    $region77: #{tpu_custom_call.1} parent=1 // pred_fallthru
      _
    %1525 = vsyncpa [#allocation3], 1
    %1526 = vsyncpa [#allocation6], 1
    %1527 = vsyncpa [#allocation9], 1
    %1528 = vsyncpa [#allocation12], 1
    %1529 = vsyncpa [#allocation4], 1

</llo_original>
